<compile_context>
chip_gen: v5e
topology: v5e:2x2
jax: 0.10.0
libtpu: 0.0.40
codegen_flags: <defaults>
</compile_context>

<pallas_src>
import jax
import jax.numpy as jnp
from jax import lax
from jax.experimental import pallas as pl
from jax.experimental.pallas import tpu as pltpu


# ----------------------------------------------------------------------------
# Fused Pallas kernel: label bias lookup + 2-layer LSTM over time + output Linear
# ----------------------------------------------------------------------------
def fused_lstm_kernel(x_ref, lab_ref, cb0_ref, wx0_ref, whh0_ref, w1m_ref,
                      b1_ref, wout_ref, bout_ref, o_ref, hseq_ref):
    """x_ref: (B,T,Din) VMEM; lab_ref: (B,) int32 SMEM; cb0_ref: (Cpad,4H) per-class
    layer-0 bias (label emb + b0 pre-folded); weights transposed (in,4H), gate order
    i,f,o,g; w1m_ref: (2H,4H) = [w_ih1; w_hh1]; o_ref: (B,T,Din)."""
    B, T, Din = x_ref.shape
    H = whh0_ref.shape[0]
    G = 4 * H
    Cp = cb0_ref.shape[0]

    # ---- hoisted, time-invariant work --------------------------------------
    # label -> per-batch layer-0 gate bias via one-hot matmul (no dynamic gather)
    iota_c = lax.broadcasted_iota(jnp.int32, (1, Cp), 1)
    onehot = jnp.concatenate(
        [(iota_c == lab_ref[b]).astype(jnp.float32) for b in range(B)], axis=0)
    bias0 = jnp.dot(onehot, cb0_ref[...],
                    preferred_element_type=jnp.float32)            # (B, 4H)

    # layer-0 input projection hoisted out of the recurrence, bias0 folded in
    x2d = x_ref[...].reshape(B * T, Din)
    gadd0 = (jnp.dot(x2d, wx0_ref[...], preferred_element_type=jnp.float32)
             .reshape(B, T, G) + bias0[:, None, :])                # (B, T, 4H)
    bias1 = jnp.broadcast_to(b1_ref[...], (B, G))                  # broadcast hoisted

    whh0 = whh0_ref[...]
    w1m = w1m_ref[...]

    def cell(gates, c):
        # gate order after column permutation: i, f, o, g
        sig = jax.nn.sigmoid(gates[:, :3 * H])                     # one contiguous EUP call
        g = jnp.tanh(gates[:, 3 * H:])
        i_g = sig[:, 0 * H:1 * H]
        f_g = sig[:, 1 * H:2 * H]
        o_g = sig[:, 2 * H:3 * H]
        c_new = f_g * c + i_g * g
        h_new = o_g * jnp.tanh(c_new)
        return h_new, c_new

    zero = jnp.zeros((B, H), jnp.float32)
    h0, c0, h1, c1 = zero, zero, zero, zero
    # T is small and static: fully unrolled so the scheduler overlaps layer-1 work
    # (which never feeds back into layer 0) with layer-0's serial chain.
    for t in range(T):
        if t == 0:
            g0 = gadd0[:, 0, :]                                    # h0 == 0: skip matmul
        else:
            g0 = gadd0[:, t, :] + jnp.dot(h0, whh0,
                                          preferred_element_type=jnp.float32)
        h0, c0 = cell(g0, c0)
        # merged layer-1 matmul: h0@w_ih1 + h1@w_hh1 in a single MXU push
        g1 = (jnp.dot(jnp.concatenate([h0, h1], axis=-1), w1m,
                      preferred_element_type=jnp.float32) + bias1)
        h1, c1 = cell(g1, c1)
        hseq_ref[:, t, :] = h1                                     # off-chain scratch store

    # ---- output projection: one matmul, single store ------------------------
    h1_seq = hseq_ref[...].reshape(B * T, H)
    out = (jnp.dot(h1_seq, wout_ref[...], preferred_element_type=jnp.float32)
           + bout_ref[...])                                        # (B*T, Din)
    o_ref[...] = out.reshape(B, T, Din).astype(o_ref.dtype)


# ----------------------------------------------------------------------------
# Wrapper
# ----------------------------------------------------------------------------
def _vmem_full(a):
    nd = a.ndim
    return pl.BlockSpec(a.shape, lambda i, nd=nd: (0,) * nd)


def fused_forward(x, label, kp):
    B, T, Din = x.shape
    H = kp["whh0"].shape[0]
    vmem_ins = (kp["class_bias0"], kp["wx0"], kp["whh0"], kp["w1m"],
                kp["b1"], kp["w_out"], kp["b_out"])
    in_specs = ([_vmem_full(x),
                 pl.BlockSpec(memory_space=pltpu.MemorySpace.SMEM)]   # labels as scalars
                + [_vmem_full(a) for a in vmem_ins])
    return pl.pallas_call(
        fused_lstm_kernel,
        out_shape=jax.ShapeDtypeStruct((B, T, Din), jnp.float32),
        grid=(1,),
        in_specs=in_specs,
        out_specs=pl.BlockSpec((B, T, Din), lambda i: (0, 0, 0)),
        scratch_shapes=[pltpu.VMEM((B, T, H), jnp.float32)],
        compiler_params=pltpu.CompilerParams(dimension_semantics=("arbitrary",)),
    )(x, label, *vmem_ins)


def prepare_kernel_params(params, input_dim):
    """One-time prep (call once, outside the forward path): gate-permute, split the
    label part of layer-0's w_ih into a per-class bias table, merge layer-1 weights."""
    assert len(params["lstm"]) == 2, "fused kernel is specialized to num_layers=2"
    l0, l1 = params["lstm"]
    H = l0["w_hh"].shape[0]
    # reorder gate columns i,f,g,o -> i,f,o,g so the sigmoids are contiguous
    perm = jnp.concatenate([jnp.arange(0, 2 * H),
                            jnp.arange(3 * H, 4 * H),
                            jnp.arange(2 * H, 3 * H)])
    pg = lambda w: w[..., perm]

    wx0 = pg(l0["w_ih"][:input_dim])                   # (Din, 4H) input part
    wlab0 = pg(l0["w_ih"][input_dim:])                 # (H,   4H) label part
    b0 = pg(l0["b"])                                   # (1,   4H)
    # per-class layer-0 gate bias: emb @ wlab0 + b0, padded to a sublane multiple
    C = params["label_emb"].shape[0]
    Cp = ((C + 7) // 8) * 8
    class_bias0 = params["label_emb"] @ wlab0 + b0     # (C, 4H)
    class_bias0 = jnp.zeros((Cp, 4 * H), jnp.float32).at[:C].set(class_bias0)

    w1m = jnp.concatenate([pg(l1["w_ih"]), pg(l1["w_hh"])], axis=0)   # (2H, 4H)

    return {
        "wx0": wx0,
        "class_bias0": class_bias0,                    # (Cpad, 4H)
        "whh0": pg(l0["w_hh"]),
        "w1m": w1m,
        "b1": pg(l1["b"]),
        "w_out": params["w_out"],                      # (H, Din)
        "b_out": params["b_out"],                      # (1, Din)
    }


@jax.jit
def diffusion_forward(kp, x, label):
    """kp: prepped params (from prepare_kernel_params, computed once);
    x: (B, T, input_dim) f32; label: (B,) int32 -> (B, T, input_dim).
    The whole forward is a single pallas_call; no pre/post XLA ops."""
    return fused_forward(x, label, kp)


# ----------------------------------------------------------------------------
# Deterministic parameter init (shapes follow nn.Embedding / nn.LSTM / nn.Linear)
# ----------------------------------------------------------------------------
def init_params(key, input_dim, hidden_dim, num_classes, num_layers):
    H = hidden_dim
    keys = iter(jax.random.split(key, 4 + 4 * num_layers))

    def rnd(shape, scale):
        return (scale * jax.random.normal(next(keys), shape)).astype(jnp.float32)

    params = {"label_emb": rnd((num_classes, H), 1.0), "lstm": []}
    for layer in range(num_layers):
        din = (input_dim + H) if layer == 0 else H
        s = 1.0 / jnp.sqrt(H)
        # stored transposed relative to PyTorch (so the kernel does x @ W), gate order i,f,g,o
        w_ih = rnd((din, 4 * H), s)
        w_hh = rnd((H, 4 * H), s)
        b = rnd((1, 4 * H), s) + rnd((1, 4 * H), s)        # b_ih + b_hh
        params["lstm"].append({"w_ih": w_ih, "w_hh": w_hh, "b": b})
    params["w_out"] = rnd((H, input_dim), 1.0 / jnp.sqrt(H))
    params["b_out"] = rnd((1, input_dim), 1.0 / jnp.sqrt(H))
    return params


# ----------------------------------------------------------------------------
# Pure-JAX reference (unpermuted params, lax.scan) for a correctness check
# ----------------------------------------------------------------------------
def reference_forward(params, x, label):
    B, T, _ = x.shape
    emb = params["label_emb"][label]
    lab = jnp.broadcast_to(emb[:, None, :], (B, T, emb.shape[-1]))
    h_seq = jnp.concatenate([x, lab], axis=-1)
    for lyr in params["lstm"]:
        H = lyr["w_hh"].shape[0]

        def step(carry, x_t, lyr=lyr, H=H):
            h, c = carry
            g = x_t @ lyr["w_ih"] + h @ lyr["w_hh"] + lyr["b"]
            i = jax.nn.sigmoid(g[:, :H])
            f = jax.nn.sigmoid(g[:, H:2 * H])
            gg = jnp.tanh(g[:, 2 * H:3 * H])
            o = jax.nn.sigmoid(g[:, 3 * H:])
            c = f * c + i * gg
            h = o * jnp.tanh(c)
            return (h, c), h

        init = (jnp.zeros((B, H), jnp.float32), jnp.zeros((B, H), jnp.float32))
        _, hs = lax.scan(step, init, jnp.transpose(h_seq, (1, 0, 2)))
        h_seq = jnp.transpose(hs, (1, 0, 2))
    return h_seq @ params["w_out"] + params["b_out"]


if __name__ == "__main__":
    input_dim, hidden_dim, num_classes, seq_len, num_layers = 4, 32, 10, 8, 2
    B = 2

    key = jax.random.PRNGKey(0)
    k_param, k_x, k_lab = jax.random.split(key, 3)
    params = init_params(k_param, input_dim, hidden_dim, num_classes, num_layers)
    x = jax.random.normal(k_x, (B, seq_len, input_dim), dtype=jnp.float32)
    label = jax.random.randint(k_lab, (B,), 0, num_classes, dtype=jnp.int32)

    # one-time parameter prep, hoisted off the per-call forward path
    kp = prepare_kernel_params(params, input_dim)
    kp = jax.tree_util.tree_map(jax.block_until_ready, kp)

    out = diffusion_forward(kp, x, label)
    jax.block_until_ready(out)

    ref = reference_forward(params, x, label)
    assert out.shape == (B, seq_len, input_dim), out.shape
    assert jnp.allclose(out, ref, atol=1e-4, rtol=1e-4), (
        "mismatch vs reference, max abs err = "
        + str(float(jnp.max(jnp.abs(out - ref)))))

    print("KERNEL_OK")
</pallas_src>

<mosaic_0001>
module attributes {stable_mosaic.version = 11 : i64} {
  func.func @fused_lstm_kernel(%arg0: i32, %arg1: memref<2x8x4xf32, #tpu.memory_space<vmem>>, %arg2: memref<2xi32, #tpu.memory_space<smem>>, %arg3: memref<16x128xf32, #tpu.memory_space<vmem>>, %arg4: memref<4x128xf32, #tpu.memory_space<vmem>>, %arg5: memref<32x128xf32, #tpu.memory_space<vmem>>, %arg6: memref<64x128xf32, #tpu.memory_space<vmem>>, %arg7: memref<1x128xf32, #tpu.memory_space<vmem>>, %arg8: memref<32x4xf32, #tpu.memory_space<vmem>>, %arg9: memref<1x4xf32, #tpu.memory_space<vmem>>, %arg10: memref<2x8x4xf32, #tpu.memory_space<vmem>>, %arg11: memref<2x8x32xf32, #tpu.memory_space<vmem>>) attributes {dimension_semantics = [#tpu.dimension_semantics<arbitrary>], iteration_bounds = array<i64: 1>, scalar_prefetch = 0 : i64, scratch_operands = 1 : i64, tpu.core_type = #tpu.core_type<tc>, window_params = [{pipeline_mode = #tpu.pipeline_mode<synchronous>, transform_indices = @transform_0, window_bounds = array<i64: 2, 8, 4>}, {transform_indices = @transform_1, window_bounds = array<i64: 2>}, {pipeline_mode = #tpu.pipeline_mode<synchronous>, transform_indices = @transform_2, window_bounds = array<i64: 16, 128>}, {pipeline_mode = #tpu.pipeline_mode<synchronous>, transform_indices = @transform_3, window_bounds = array<i64: 4, 128>}, {pipeline_mode = #tpu.pipeline_mode<synchronous>, transform_indices = @transform_4, window_bounds = array<i64: 32, 128>}, {pipeline_mode = #tpu.pipeline_mode<synchronous>, transform_indices = @transform_5, window_bounds = array<i64: 64, 128>}, {pipeline_mode = #tpu.pipeline_mode<synchronous>, transform_indices = @transform_6, window_bounds = array<i64: 1, 128>}, {pipeline_mode = #tpu.pipeline_mode<synchronous>, transform_indices = @transform_7, window_bounds = array<i64: 32, 4>}, {pipeline_mode = #tpu.pipeline_mode<synchronous>, transform_indices = @transform_8, window_bounds = array<i64: 1, 4>}, {pipeline_mode = #tpu.pipeline_mode<synchronous>, transform_indices = @transform_9, window_bounds = array<i64: 2, 8, 4>}]} {
    %0 = tpu.iota {dimensions = array<i32: 1>} : vector<1x16xi32>
    %c0 = arith.constant 0 : index
    %1 = memref.load %arg2[%c0] : memref<2xi32, #tpu.memory_space<smem>>
    %2 = vector.broadcast %1 : i32 to vector<1x16xi32>
    %3 = arith.cmpi eq, %0, %2 : vector<1x16xi32>
    %4 = arith.extui %3 : vector<1x16xi1> to vector<1x16xi32>
    %5 = arith.sitofp %4 : vector<1x16xi32> to vector<1x16xf32>
    %c1 = arith.constant 1 : index
    %6 = memref.load %arg2[%c1] : memref<2xi32, #tpu.memory_space<smem>>
    %7 = vector.broadcast %6 : i32 to vector<1x16xi32>
    %8 = arith.cmpi eq, %0, %7 : vector<1x16xi32>
    %9 = arith.extui %8 : vector<1x16xi1> to vector<1x16xi32>
    %10 = arith.sitofp %9 : vector<1x16xi32> to vector<1x16xf32>
    %11 = tpu.concatenate %5, %10 in 0 : vector<1x16xf32>, vector<1x16xf32> -> vector<2x16xf32>
    %c0_0 = arith.constant 0 : index
    %c0_1 = arith.constant 0 : index
    %12 = vector.load %arg3[%c0_0, %c0_1] : memref<16x128xf32, #tpu.memory_space<vmem>>, vector<16x128xf32>
    %cst = arith.constant dense<0.000000e+00> : vector<2x128xf32>
    %13 = tpu.matmul %11, %12, %cst {dimension_numbers = #tpu.dot_dimension_numbers<[1], [0], [0], [1], [0, 0, 1, 1], [], []>} : vector<2x16xf32>, vector<16x128xf32>, vector<2x128xf32> -> vector<2x128xf32>
    %c0_2 = arith.constant 0 : index
    %c0_3 = arith.constant 0 : index
    %c0_4 = arith.constant 0 : index
    %14 = vector.load %arg1[%c0_2, %c0_3, %c0_4] : memref<2x8x4xf32, #tpu.memory_space<vmem>>, vector<2x8x4xf32>
    %15 = vector.shape_cast %14 : vector<2x8x4xf32> to vector<16x4xf32>
    %c0_5 = arith.constant 0 : index
    %c0_6 = arith.constant 0 : index
    %16 = vector.load %arg4[%c0_5, %c0_6] : memref<4x128xf32, #tpu.memory_space<vmem>>, vector<4x128xf32>
    %cst_7 = arith.constant dense<0.000000e+00> : vector<16x128xf32>
    %17 = tpu.matmul %15, %16, %cst_7 {dimension_numbers = #tpu.dot_dimension_numbers<[1], [0], [0], [1], [0, 0, 1, 1], [], []>} : vector<16x4xf32>, vector<4x128xf32>, vector<16x128xf32> -> vector<16x128xf32>
    %18 = vector.shape_cast %17 : vector<16x128xf32> to vector<2x8x128xf32>
    %19 = vector.shape_cast %13 : vector<2x128xf32> to vector<2x1x128xf32>
    %20 = vector.broadcast %19 : vector<2x1x128xf32> to vector<2x8x128xf32>
    %21 = arith.addf %18, %20 : vector<2x8x128xf32>
    %c0_8 = arith.constant 0 : index
    %c0_9 = arith.constant 0 : index
    %22 = vector.load %arg7[%c0_8, %c0_9] : memref<1x128xf32, #tpu.memory_space<vmem>>, vector<1x128xf32>
    %23 = vector.shape_cast %22 : vector<1x128xf32> to vector<1x128xf32>
    %24 = vector.broadcast %23 : vector<1x128xf32> to vector<2x128xf32>
    %c0_10 = arith.constant 0 : index
    %c0_11 = arith.constant 0 : index
    %25 = vector.load %arg5[%c0_10, %c0_11] : memref<32x128xf32, #tpu.memory_space<vmem>>, vector<32x128xf32>
    %c0_12 = arith.constant 0 : index
    %c0_13 = arith.constant 0 : index
    %26 = vector.load %arg6[%c0_12, %c0_13] : memref<64x128xf32, #tpu.memory_space<vmem>>, vector<64x128xf32>
    %cst_14 = arith.constant 0.000000e+00 : f32
    %27 = vector.broadcast %cst_14 : f32 to vector<2x32xf32>
    %28 = vector.extract_strided_slice %21 {offsets = [0, 0, 0], sizes = [2, 1, 128], strides = [1, 1, 1]} : vector<2x8x128xf32> to vector<2x1x128xf32>
    %29 = vector.shape_cast %28 : vector<2x1x128xf32> to vector<2x128xf32>
    %30 = vector.extract_strided_slice %29 {offsets = [0, 0], sizes = [2, 96], strides = [1, 1]} : vector<2x128xf32> to vector<2x96xf32>
    %31 = arith.negf %30 : vector<2x96xf32>
    %32 = math.exp %31 : vector<2x96xf32>
    %cst_15 = arith.constant 1.000000e+00 : f32
    %33 = vector.broadcast %cst_15 : f32 to vector<2x96xf32>
    %34 = arith.addf %33, %32 : vector<2x96xf32>
    %35 = arith.divf %33, %34 : vector<2x96xf32>
    %36 = vector.extract_strided_slice %29 {offsets = [0, 96], sizes = [2, 32], strides = [1, 1]} : vector<2x128xf32> to vector<2x32xf32>
    %37 = math.tanh %36 : vector<2x32xf32>
    %38 = vector.extract_strided_slice %35 {offsets = [0, 0], sizes = [2, 32], strides = [1, 1]} : vector<2x96xf32> to vector<2x32xf32>
    %39 = vector.extract_strided_slice %35 {offsets = [0, 32], sizes = [2, 32], strides = [1, 1]} : vector<2x96xf32> to vector<2x32xf32>
    %40 = vector.extract_strided_slice %35 {offsets = [0, 64], sizes = [2, 32], strides = [1, 1]} : vector<2x96xf32> to vector<2x32xf32>
    %41 = arith.mulf %39, %27 : vector<2x32xf32>
    %42 = arith.mulf %38, %37 : vector<2x32xf32>
    %43 = arith.addf %41, %42 : vector<2x32xf32>
    %44 = math.tanh %43 : vector<2x32xf32>
    %45 = arith.mulf %40, %44 : vector<2x32xf32>
    %46 = tpu.concatenate %45, %27 in 1 : vector<2x32xf32>, vector<2x32xf32> -> vector<2x64xf32>
    %cst_16 = arith.constant dense<0.000000e+00> : vector<2x128xf32>
    %47 = tpu.matmul %46, %26, %cst_16 {dimension_numbers = #tpu.dot_dimension_numbers<[1], [0], [0], [1], [0, 0, 1, 1], [], []>} : vector<2x64xf32>, vector<64x128xf32>, vector<2x128xf32> -> vector<2x128xf32>
    %48 = arith.addf %47, %24 : vector<2x128xf32>
    %49 = vector.extract_strided_slice %48 {offsets = [0, 0], sizes = [2, 96], strides = [1, 1]} : vector<2x128xf32> to vector<2x96xf32>
    %50 = arith.negf %49 : vector<2x96xf32>
    %51 = math.exp %50 : vector<2x96xf32>
    %cst_17 = arith.constant 1.000000e+00 : f32
    %52 = vector.broadcast %cst_17 : f32 to vector<2x96xf32>
    %53 = arith.addf %52, %51 : vector<2x96xf32>
    %54 = arith.divf %52, %53 : vector<2x96xf32>
    %55 = vector.extract_strided_slice %48 {offsets = [0, 96], sizes = [2, 32], strides = [1, 1]} : vector<2x128xf32> to vector<2x32xf32>
    %56 = math.tanh %55 : vector<2x32xf32>
    %57 = vector.extract_strided_slice %54 {offsets = [0, 0], sizes = [2, 32], strides = [1, 1]} : vector<2x96xf32> to vector<2x32xf32>
    %58 = vector.extract_strided_slice %54 {offsets = [0, 32], sizes = [2, 32], strides = [1, 1]} : vector<2x96xf32> to vector<2x32xf32>
    %59 = vector.extract_strided_slice %54 {offsets = [0, 64], sizes = [2, 32], strides = [1, 1]} : vector<2x96xf32> to vector<2x32xf32>
    %60 = arith.mulf %58, %27 : vector<2x32xf32>
    %61 = arith.mulf %57, %56 : vector<2x32xf32>
    %62 = arith.addf %60, %61 : vector<2x32xf32>
    %63 = math.tanh %62 : vector<2x32xf32>
    %64 = arith.mulf %59, %63 : vector<2x32xf32>
    %c0_18 = arith.constant 0 : index
    %c0_19 = arith.constant 0 : index
    %c0_20 = arith.constant 0 : index
    %65 = vector.load %arg11[%c0_18, %c0_19, %c0_20] : memref<2x8x32xf32, #tpu.memory_space<vmem>>, vector<2x1x32xf32>
    %66 = vector.shape_cast %65 : vector<2x1x32xf32> to vector<2x32xf32>
    %67 = vector.shape_cast %64 : vector<2x32xf32> to vector<2x1x32xf32>
    tpu.vector_store %arg11[%c0_18, %c0_19, %c0_20], %67 {strides = array<i32>} : memref<2x8x32xf32, #tpu.memory_space<vmem>>, vector<2x1x32xf32>,
    %68 = vector.extract_strided_slice %21 {offsets = [0, 1, 0], sizes = [2, 1, 128], strides = [1, 1, 1]} : vector<2x8x128xf32> to vector<2x1x128xf32>
    %69 = vector.shape_cast %68 : vector<2x1x128xf32> to vector<2x128xf32>
    %cst_21 = arith.constant dense<0.000000e+00> : vector<2x128xf32>
    %70 = tpu.matmul %45, %25, %cst_21 {dimension_numbers = #tpu.dot_dimension_numbers<[1], [0], [0], [1], [0, 0, 1, 1], [], []>} : vector<2x32xf32>, vector<32x128xf32>, vector<2x128xf32> -> vector<2x128xf32>
    %71 = arith.addf %69, %70 : vector<2x128xf32>
    %72 = vector.extract_strided_slice %71 {offsets = [0, 0], sizes = [2, 96], strides = [1, 1]} : vector<2x128xf32> to vector<2x96xf32>
    %73 = arith.negf %72 : vector<2x96xf32>
    %74 = math.exp %73 : vector<2x96xf32>
    %cst_22 = arith.constant 1.000000e+00 : f32
    %75 = vector.broadcast %cst_22 : f32 to vector<2x96xf32>
    %76 = arith.addf %75, %74 : vector<2x96xf32>
    %77 = arith.divf %75, %76 : vector<2x96xf32>
    %78 = vector.extract_strided_slice %71 {offsets = [0, 96], sizes = [2, 32], strides = [1, 1]} : vector<2x128xf32> to vector<2x32xf32>
    %79 = math.tanh %78 : vector<2x32xf32>
    %80 = vector.extract_strided_slice %77 {offsets = [0, 0], sizes = [2, 32], strides = [1, 1]} : vector<2x96xf32> to vector<2x32xf32>
    %81 = vector.extract_strided_slice %77 {offsets = [0, 32], sizes = [2, 32], strides = [1, 1]} : vector<2x96xf32> to vector<2x32xf32>
    %82 = vector.extract_strided_slice %77 {offsets = [0, 64], sizes = [2, 32], strides = [1, 1]} : vector<2x96xf32> to vector<2x32xf32>
    %83 = arith.mulf %81, %43 : vector<2x32xf32>
    %84 = arith.mulf %80, %79 : vector<2x32xf32>
    %85 = arith.addf %83, %84 : vector<2x32xf32>
    %86 = math.tanh %85 : vector<2x32xf32>
    %87 = arith.mulf %82, %86 : vector<2x32xf32>
    %88 = tpu.concatenate %87, %64 in 1 : vector<2x32xf32>, vector<2x32xf32> -> vector<2x64xf32>
    %cst_23 = arith.constant dense<0.000000e+00> : vector<2x128xf32>
    %89 = tpu.matmul %88, %26, %cst_23 {dimension_numbers = #tpu.dot_dimension_numbers<[1], [0], [0], [1], [0, 0, 1, 1], [], []>} : vector<2x64xf32>, vector<64x128xf32>, vector<2x128xf32> -> vector<2x128xf32>
    %90 = arith.addf %89, %24 : vector<2x128xf32>
    %91 = vector.extract_strided_slice %90 {offsets = [0, 0], sizes = [2, 96], strides = [1, 1]} : vector<2x128xf32> to vector<2x96xf32>
    %92 = arith.negf %91 : vector<2x96xf32>
    %93 = math.exp %92 : vector<2x96xf32>
    %cst_24 = arith.constant 1.000000e+00 : f32
    %94 = vector.broadcast %cst_24 : f32 to vector<2x96xf32>
    %95 = arith.addf %94, %93 : vector<2x96xf32>
    %96 = arith.divf %94, %95 : vector<2x96xf32>
    %97 = vector.extract_strided_slice %90 {offsets = [0, 96], sizes = [2, 32], strides = [1, 1]} : vector<2x128xf32> to vector<2x32xf32>
    %98 = math.tanh %97 : vector<2x32xf32>
    %99 = vector.extract_strided_slice %96 {offsets = [0, 0], sizes = [2, 32], strides = [1, 1]} : vector<2x96xf32> to vector<2x32xf32>
    %100 = vector.extract_strided_slice %96 {offsets = [0, 32], sizes = [2, 32], strides = [1, 1]} : vector<2x96xf32> to vector<2x32xf32>
    %101 = vector.extract_strided_slice %96 {offsets = [0, 64], sizes = [2, 32], strides = [1, 1]} : vector<2x96xf32> to vector<2x32xf32>
    %102 = arith.mulf %100, %62 : vector<2x32xf32>
    %103 = arith.mulf %99, %98 : vector<2x32xf32>
    %104 = arith.addf %102, %103 : vector<2x32xf32>
    %105 = math.tanh %104 : vector<2x32xf32>
    %106 = arith.mulf %101, %105 : vector<2x32xf32>
    %c0_25 = arith.constant 0 : index
    %c1_26 = arith.constant 1 : index
    %c0_27 = arith.constant 0 : index
    %107 = vector.load %arg11[%c0_25, %c1_26, %c0_27] : memref<2x8x32xf32, #tpu.memory_space<vmem>>, vector<2x1x32xf32>
    %108 = vector.shape_cast %107 : vector<2x1x32xf32> to vector<2x32xf32>
    %109 = vector.shape_cast %106 : vector<2x32xf32> to vector<2x1x32xf32>
    tpu.vector_store %arg11[%c0_25, %c1_26, %c0_27], %109 {strides = array<i32>} : memref<2x8x32xf32, #tpu.memory_space<vmem>>, vector<2x1x32xf32>,
    %110 = vector.extract_strided_slice %21 {offsets = [0, 2, 0], sizes = [2, 1, 128], strides = [1, 1, 1]} : vector<2x8x128xf32> to vector<2x1x128xf32>
    %111 = vector.shape_cast %110 : vector<2x1x128xf32> to vector<2x128xf32>
    %cst_28 = arith.constant dense<0.000000e+00> : vector<2x128xf32>
    %112 = tpu.matmul %87, %25, %cst_28 {dimension_numbers = #tpu.dot_dimension_numbers<[1], [0], [0], [1], [0, 0, 1, 1], [], []>} : vector<2x32xf32>, vector<32x128xf32>, vector<2x128xf32> -> vector<2x128xf32>
    %113 = arith.addf %111, %112 : vector<2x128xf32>
    %114 = vector.extract_strided_slice %113 {offsets = [0, 0], sizes = [2, 96], strides = [1, 1]} : vector<2x128xf32> to vector<2x96xf32>
    %115 = arith.negf %114 : vector<2x96xf32>
    %116 = math.exp %115 : vector<2x96xf32>
    %cst_29 = arith.constant 1.000000e+00 : f32
    %117 = vector.broadcast %cst_29 : f32 to vector<2x96xf32>
    %118 = arith.addf %117, %116 : vector<2x96xf32>
    %119 = arith.divf %117, %118 : vector<2x96xf32>
    %120 = vector.extract_strided_slice %113 {offsets = [0, 96], sizes = [2, 32], strides = [1, 1]} : vector<2x128xf32> to vector<2x32xf32>
    %121 = math.tanh %120 : vector<2x32xf32>
    %122 = vector.extract_strided_slice %119 {offsets = [0, 0], sizes = [2, 32], strides = [1, 1]} : vector<2x96xf32> to vector<2x32xf32>
    %123 = vector.extract_strided_slice %119 {offsets = [0, 32], sizes = [2, 32], strides = [1, 1]} : vector<2x96xf32> to vector<2x32xf32>
    %124 = vector.extract_strided_slice %119 {offsets = [0, 64], sizes = [2, 32], strides = [1, 1]} : vector<2x96xf32> to vector<2x32xf32>
    %125 = arith.mulf %123, %85 : vector<2x32xf32>
    %126 = arith.mulf %122, %121 : vector<2x32xf32>
    %127 = arith.addf %125, %126 : vector<2x32xf32>
    %128 = math.tanh %127 : vector<2x32xf32>
    %129 = arith.mulf %124, %128 : vector<2x32xf32>
    %130 = tpu.concatenate %129, %106 in 1 : vector<2x32xf32>, vector<2x32xf32> -> vector<2x64xf32>
    %cst_30 = arith.constant dense<0.000000e+00> : vector<2x128xf32>
    %131 = tpu.matmul %130, %26, %cst_30 {dimension_numbers = #tpu.dot_dimension_numbers<[1], [0], [0], [1], [0, 0, 1, 1], [], []>} : vector<2x64xf32>, vector<64x128xf32>, vector<2x128xf32> -> vector<2x128xf32>
    %132 = arith.addf %131, %24 : vector<2x128xf32>
    %133 = vector.extract_strided_slice %132 {offsets = [0, 0], sizes = [2, 96], strides = [1, 1]} : vector<2x128xf32> to vector<2x96xf32>
    %134 = arith.negf %133 : vector<2x96xf32>
    %135 = math.exp %134 : vector<2x96xf32>
    %cst_31 = arith.constant 1.000000e+00 : f32
    %136 = vector.broadcast %cst_31 : f32 to vector<2x96xf32>
    %137 = arith.addf %136, %135 : vector<2x96xf32>
    %138 = arith.divf %136, %137 : vector<2x96xf32>
    %139 = vector.extract_strided_slice %132 {offsets = [0, 96], sizes = [2, 32], strides = [1, 1]} : vector<2x128xf32> to vector<2x32xf32>
    %140 = math.tanh %139 : vector<2x32xf32>
    %141 = vector.extract_strided_slice %138 {offsets = [0, 0], sizes = [2, 32], strides = [1, 1]} : vector<2x96xf32> to vector<2x32xf32>
    %142 = vector.extract_strided_slice %138 {offsets = [0, 32], sizes = [2, 32], strides = [1, 1]} : vector<2x96xf32> to vector<2x32xf32>
    %143 = vector.extract_strided_slice %138 {offsets = [0, 64], sizes = [2, 32], strides = [1, 1]} : vector<2x96xf32> to vector<2x32xf32>
    %144 = arith.mulf %142, %104 : vector<2x32xf32>
    %145 = arith.mulf %141, %140 : vector<2x32xf32>
    %146 = arith.addf %144, %145 : vector<2x32xf32>
    %147 = math.tanh %146 : vector<2x32xf32>
    %148 = arith.mulf %143, %147 : vector<2x32xf32>
    %c0_32 = arith.constant 0 : index
    %c2 = arith.constant 2 : index
    %c0_33 = arith.constant 0 : index
    %149 = vector.load %arg11[%c0_32, %c2, %c0_33] : memref<2x8x32xf32, #tpu.memory_space<vmem>>, vector<2x1x32xf32>
    %150 = vector.shape_cast %149 : vector<2x1x32xf32> to vector<2x32xf32>
    %151 = vector.shape_cast %148 : vector<2x32xf32> to vector<2x1x32xf32>
    tpu.vector_store %arg11[%c0_32, %c2, %c0_33], %151 {strides = array<i32>} : memref<2x8x32xf32, #tpu.memory_space<vmem>>, vector<2x1x32xf32>,
    %152 = vector.extract_strided_slice %21 {offsets = [0, 3, 0], sizes = [2, 1, 128], strides = [1, 1, 1]} : vector<2x8x128xf32> to vector<2x1x128xf32>
    %153 = vector.shape_cast %152 : vector<2x1x128xf32> to vector<2x128xf32>
    %cst_34 = arith.constant dense<0.000000e+00> : vector<2x128xf32>
    %154 = tpu.matmul %129, %25, %cst_34 {dimension_numbers = #tpu.dot_dimension_numbers<[1], [0], [0], [1], [0, 0, 1, 1], [], []>} : vector<2x32xf32>, vector<32x128xf32>, vector<2x128xf32> -> vector<2x128xf32>
    %155 = arith.addf %153, %154 : vector<2x128xf32>
    %156 = vector.extract_strided_slice %155 {offsets = [0, 0], sizes = [2, 96], strides = [1, 1]} : vector<2x128xf32> to vector<2x96xf32>
    %157 = arith.negf %156 : vector<2x96xf32>
    %158 = math.exp %157 : vector<2x96xf32>
    %cst_35 = arith.constant 1.000000e+00 : f32
    %159 = vector.broadcast %cst_35 : f32 to vector<2x96xf32>
    %160 = arith.addf %159, %158 : vector<2x96xf32>
    %161 = arith.divf %159, %160 : vector<2x96xf32>
    %162 = vector.extract_strided_slice %155 {offsets = [0, 96], sizes = [2, 32], strides = [1, 1]} : vector<2x128xf32> to vector<2x32xf32>
    %163 = math.tanh %162 : vector<2x32xf32>
    %164 = vector.extract_strided_slice %161 {offsets = [0, 0], sizes = [2, 32], strides = [1, 1]} : vector<2x96xf32> to vector<2x32xf32>
    %165 = vector.extract_strided_slice %161 {offsets = [0, 32], sizes = [2, 32], strides = [1, 1]} : vector<2x96xf32> to vector<2x32xf32>
    %166 = vector.extract_strided_slice %161 {offsets = [0, 64], sizes = [2, 32], strides = [1, 1]} : vector<2x96xf32> to vector<2x32xf32>
    %167 = arith.mulf %165, %127 : vector<2x32xf32>
    %168 = arith.mulf %164, %163 : vector<2x32xf32>
    %169 = arith.addf %167, %168 : vector<2x32xf32>
    %170 = math.tanh %169 : vector<2x32xf32>
    %171 = arith.mulf %166, %170 : vector<2x32xf32>
    %172 = tpu.concatenate %171, %148 in 1 : vector<2x32xf32>, vector<2x32xf32> -> vector<2x64xf32>
    %cst_36 = arith.constant dense<0.000000e+00> : vector<2x128xf32>
    %173 = tpu.matmul %172, %26, %cst_36 {dimension_numbers = #tpu.dot_dimension_numbers<[1], [0], [0], [1], [0, 0, 1, 1], [], []>} : vector<2x64xf32>, vector<64x128xf32>, vector<2x128xf32> -> vector<2x128xf32>
    %174 = arith.addf %173, %24 : vector<2x128xf32>
    %175 = vector.extract_strided_slice %174 {offsets = [0, 0], sizes = [2, 96], strides = [1, 1]} : vector<2x128xf32> to vector<2x96xf32>
    %176 = arith.negf %175 : vector<2x96xf32>
    %177 = math.exp %176 : vector<2x96xf32>
    %cst_37 = arith.constant 1.000000e+00 : f32
    %178 = vector.broadcast %cst_37 : f32 to vector<2x96xf32>
    %179 = arith.addf %178, %177 : vector<2x96xf32>
    %180 = arith.divf %178, %179 : vector<2x96xf32>
    %181 = vector.extract_strided_slice %174 {offsets = [0, 96], sizes = [2, 32], strides = [1, 1]} : vector<2x128xf32> to vector<2x32xf32>
    %182 = math.tanh %181 : vector<2x32xf32>
    %183 = vector.extract_strided_slice %180 {offsets = [0, 0], sizes = [2, 32], strides = [1, 1]} : vector<2x96xf32> to vector<2x32xf32>
    %184 = vector.extract_strided_slice %180 {offsets = [0, 32], sizes = [2, 32], strides = [1, 1]} : vector<2x96xf32> to vector<2x32xf32>
    %185 = vector.extract_strided_slice %180 {offsets = [0, 64], sizes = [2, 32], strides = [1, 1]} : vector<2x96xf32> to vector<2x32xf32>
    %186 = arith.mulf %184, %146 : vector<2x32xf32>
    %187 = arith.mulf %183, %182 : vector<2x32xf32>
    %188 = arith.addf %186, %187 : vector<2x32xf32>
    %189 = math.tanh %188 : vector<2x32xf32>
    %190 = arith.mulf %185, %189 : vector<2x32xf32>
    %c0_38 = arith.constant 0 : index
    %c3 = arith.constant 3 : index
    %c0_39 = arith.constant 0 : index
    %191 = vector.load %arg11[%c0_38, %c3, %c0_39] : memref<2x8x32xf32, #tpu.memory_space<vmem>>, vector<2x1x32xf32>
    %192 = vector.shape_cast %191 : vector<2x1x32xf32> to vector<2x32xf32>
    %193 = vector.shape_cast %190 : vector<2x32xf32> to vector<2x1x32xf32>
    tpu.vector_store %arg11[%c0_38, %c3, %c0_39], %193 {strides = array<i32>} : memref<2x8x32xf32, #tpu.memory_space<vmem>>, vector<2x1x32xf32>,
    %194 = vector.extract_strided_slice %21 {offsets = [0, 4, 0], sizes = [2, 1, 128], strides = [1, 1, 1]} : vector<2x8x128xf32> to vector<2x1x128xf32>
    %195 = vector.shape_cast %194 : vector<2x1x128xf32> to vector<2x128xf32>
    %cst_40 = arith.constant dense<0.000000e+00> : vector<2x128xf32>
    %196 = tpu.matmul %171, %25, %cst_40 {dimension_numbers = #tpu.dot_dimension_numbers<[1], [0], [0], [1], [0, 0, 1, 1], [], []>} : vector<2x32xf32>, vector<32x128xf32>, vector<2x128xf32> -> vector<2x128xf32>
    %197 = arith.addf %195, %196 : vector<2x128xf32>
    %198 = vector.extract_strided_slice %197 {offsets = [0, 0], sizes = [2, 96], strides = [1, 1]} : vector<2x128xf32> to vector<2x96xf32>
    %199 = arith.negf %198 : vector<2x96xf32>
    %200 = math.exp %199 : vector<2x96xf32>
    %cst_41 = arith.constant 1.000000e+00 : f32
    %201 = vector.broadcast %cst_41 : f32 to vector<2x96xf32>
    %202 = arith.addf %201, %200 : vector<2x96xf32>
    %203 = arith.divf %201, %202 : vector<2x96xf32>
    %204 = vector.extract_strided_slice %197 {offsets = [0, 96], sizes = [2, 32], strides = [1, 1]} : vector<2x128xf32> to vector<2x32xf32>
    %205 = math.tanh %204 : vector<2x32xf32>
    %206 = vector.extract_strided_slice %203 {offsets = [0, 0], sizes = [2, 32], strides = [1, 1]} : vector<2x96xf32> to vector<2x32xf32>
    %207 = vector.extract_strided_slice %203 {offsets = [0, 32], sizes = [2, 32], strides = [1, 1]} : vector<2x96xf32> to vector<2x32xf32>
    %208 = vector.extract_strided_slice %203 {offsets = [0, 64], sizes = [2, 32], strides = [1, 1]} : vector<2x96xf32> to vector<2x32xf32>
    %209 = arith.mulf %207, %169 : vector<2x32xf32>
    %210 = arith.mulf %206, %205 : vector<2x32xf32>
    %211 = arith.addf %209, %210 : vector<2x32xf32>
    %212 = math.tanh %211 : vector<2x32xf32>
    %213 = arith.mulf %208, %212 : vector<2x32xf32>
    %214 = tpu.concatenate %213, %190 in 1 : vector<2x32xf32>, vector<2x32xf32> -> vector<2x64xf32>
    %cst_42 = arith.constant dense<0.000000e+00> : vector<2x128xf32>
    %215 = tpu.matmul %214, %26, %cst_42 {dimension_numbers = #tpu.dot_dimension_numbers<[1], [0], [0], [1], [0, 0, 1, 1], [], []>} : vector<2x64xf32>, vector<64x128xf32>, vector<2x128xf32> -> vector<2x128xf32>
    %216 = arith.addf %215, %24 : vector<2x128xf32>
    %217 = vector.extract_strided_slice %216 {offsets = [0, 0], sizes = [2, 96], strides = [1, 1]} : vector<2x128xf32> to vector<2x96xf32>
    %218 = arith.negf %217 : vector<2x96xf32>
    %219 = math.exp %218 : vector<2x96xf32>
    %cst_43 = arith.constant 1.000000e+00 : f32
    %220 = vector.broadcast %cst_43 : f32 to vector<2x96xf32>
    %221 = arith.addf %220, %219 : vector<2x96xf32>
    %222 = arith.divf %220, %221 : vector<2x96xf32>
    %223 = vector.extract_strided_slice %216 {offsets = [0, 96], sizes = [2, 32], strides = [1, 1]} : vector<2x128xf32> to vector<2x32xf32>
    %224 = math.tanh %223 : vector<2x32xf32>
    %225 = vector.extract_strided_slice %222 {offsets = [0, 0], sizes = [2, 32], strides = [1, 1]} : vector<2x96xf32> to vector<2x32xf32>
    %226 = vector.extract_strided_slice %222 {offsets = [0, 32], sizes = [2, 32], strides = [1, 1]} : vector<2x96xf32> to vector<2x32xf32>
    %227 = vector.extract_strided_slice %222 {offsets = [0, 64], sizes = [2, 32], strides = [1, 1]} : vector<2x96xf32> to vector<2x32xf32>
    %228 = arith.mulf %226, %188 : vector<2x32xf32>
    %229 = arith.mulf %225, %224 : vector<2x32xf32>
    %230 = arith.addf %228, %229 : vector<2x32xf32>
    %231 = math.tanh %230 : vector<2x32xf32>
    %232 = arith.mulf %227, %231 : vector<2x32xf32>
    %c0_44 = arith.constant 0 : index
    %c4 = arith.constant 4 : index
    %c0_45 = arith.constant 0 : index
    %233 = vector.load %arg11[%c0_44, %c4, %c0_45] : memref<2x8x32xf32, #tpu.memory_space<vmem>>, vector<2x1x32xf32>
    %234 = vector.shape_cast %233 : vector<2x1x32xf32> to vector<2x32xf32>
    %235 = vector.shape_cast %232 : vector<2x32xf32> to vector<2x1x32xf32>
    tpu.vector_store %arg11[%c0_44, %c4, %c0_45], %235 {strides = array<i32>} : memref<2x8x32xf32, #tpu.memory_space<vmem>>, vector<2x1x32xf32>,
    %236 = vector.extract_strided_slice %21 {offsets = [0, 5, 0], sizes = [2, 1, 128], strides = [1, 1, 1]} : vector<2x8x128xf32> to vector<2x1x128xf32>
    %237 = vector.shape_cast %236 : vector<2x1x128xf32> to vector<2x128xf32>
    %cst_46 = arith.constant dense<0.000000e+00> : vector<2x128xf32>
    %238 = tpu.matmul %213, %25, %cst_46 {dimension_numbers = #tpu.dot_dimension_numbers<[1], [0], [0], [1], [0, 0, 1, 1], [], []>} : vector<2x32xf32>, vector<32x128xf32>, vector<2x128xf32> -> vector<2x128xf32>
    %239 = arith.addf %237, %238 : vector<2x128xf32>
    %240 = vector.extract_strided_slice %239 {offsets = [0, 0], sizes = [2, 96], strides = [1, 1]} : vector<2x128xf32> to vector<2x96xf32>
    %241 = arith.negf %240 : vector<2x96xf32>
    %242 = math.exp %241 : vector<2x96xf32>
    %cst_47 = arith.constant 1.000000e+00 : f32
    %243 = vector.broadcast %cst_47 : f32 to vector<2x96xf32>
    %244 = arith.addf %243, %242 : vector<2x96xf32>
    %245 = arith.divf %243, %244 : vector<2x96xf32>
    %246 = vector.extract_strided_slice %239 {offsets = [0, 96], sizes = [2, 32], strides = [1, 1]} : vector<2x128xf32> to vector<2x32xf32>
    %247 = math.tanh %246 : vector<2x32xf32>
    %248 = vector.extract_strided_slice %245 {offsets = [0, 0], sizes = [2, 32], strides = [1, 1]} : vector<2x96xf32> to vector<2x32xf32>
    %249 = vector.extract_strided_slice %245 {offsets = [0, 32], sizes = [2, 32], strides = [1, 1]} : vector<2x96xf32> to vector<2x32xf32>
    %250 = vector.extract_strided_slice %245 {offsets = [0, 64], sizes = [2, 32], strides = [1, 1]} : vector<2x96xf32> to vector<2x32xf32>
    %251 = arith.mulf %249, %211 : vector<2x32xf32>
    %252 = arith.mulf %248, %247 : vector<2x32xf32>
    %253 = arith.addf %251, %252 : vector<2x32xf32>
    %254 = math.tanh %253 : vector<2x32xf32>
    %255 = arith.mulf %250, %254 : vector<2x32xf32>
    %256 = tpu.concatenate %255, %232 in 1 : vector<2x32xf32>, vector<2x32xf32> -> vector<2x64xf32>
    %cst_48 = arith.constant dense<0.000000e+00> : vector<2x128xf32>
    %257 = tpu.matmul %256, %26, %cst_48 {dimension_numbers = #tpu.dot_dimension_numbers<[1], [0], [0], [1], [0, 0, 1, 1], [], []>} : vector<2x64xf32>, vector<64x128xf32>, vector<2x128xf32> -> vector<2x128xf32>
    %258 = arith.addf %257, %24 : vector<2x128xf32>
    %259 = vector.extract_strided_slice %258 {offsets = [0, 0], sizes = [2, 96], strides = [1, 1]} : vector<2x128xf32> to vector<2x96xf32>
    %260 = arith.negf %259 : vector<2x96xf32>
    %261 = math.exp %260 : vector<2x96xf32>
    %cst_49 = arith.constant 1.000000e+00 : f32
    %262 = vector.broadcast %cst_49 : f32 to vector<2x96xf32>
    %263 = arith.addf %262, %261 : vector<2x96xf32>
    %264 = arith.divf %262, %263 : vector<2x96xf32>
    %265 = vector.extract_strided_slice %258 {offsets = [0, 96], sizes = [2, 32], strides = [1, 1]} : vector<2x128xf32> to vector<2x32xf32>
    %266 = math.tanh %265 : vector<2x32xf32>
    %267 = vector.extract_strided_slice %264 {offsets = [0, 0], sizes = [2, 32], strides = [1, 1]} : vector<2x96xf32> to vector<2x32xf32>
    %268 = vector.extract_strided_slice %264 {offsets = [0, 32], sizes = [2, 32], strides = [1, 1]} : vector<2x96xf32> to vector<2x32xf32>
    %269 = vector.extract_strided_slice %264 {offsets = [0, 64], sizes = [2, 32], strides = [1, 1]} : vector<2x96xf32> to vector<2x32xf32>
    %270 = arith.mulf %268, %230 : vector<2x32xf32>
    %271 = arith.mulf %267, %266 : vector<2x32xf32>
    %272 = arith.addf %270, %271 : vector<2x32xf32>
    %273 = math.tanh %272 : vector<2x32xf32>
    %274 = arith.mulf %269, %273 : vector<2x32xf32>
    %c0_50 = arith.constant 0 : index
    %c5 = arith.constant 5 : index
    %c0_51 = arith.constant 0 : index
    %275 = vector.load %arg11[%c0_50, %c5, %c0_51] : memref<2x8x32xf32, #tpu.memory_space<vmem>>, vector<2x1x32xf32>
    %276 = vector.shape_cast %275 : vector<2x1x32xf32> to vector<2x32xf32>
    %277 = vector.shape_cast %274 : vector<2x32xf32> to vector<2x1x32xf32>
    tpu.vector_store %arg11[%c0_50, %c5, %c0_51], %277 {strides = array<i32>} : memref<2x8x32xf32, #tpu.memory_space<vmem>>, vector<2x1x32xf32>,
    %278 = vector.extract_strided_slice %21 {offsets = [0, 6, 0], sizes = [2, 1, 128], strides = [1, 1, 1]} : vector<2x8x128xf32> to vector<2x1x128xf32>
    %279 = vector.shape_cast %278 : vector<2x1x128xf32> to vector<2x128xf32>
    %cst_52 = arith.constant dense<0.000000e+00> : vector<2x128xf32>
    %280 = tpu.matmul %255, %25, %cst_52 {dimension_numbers = #tpu.dot_dimension_numbers<[1], [0], [0], [1], [0, 0, 1, 1], [], []>} : vector<2x32xf32>, vector<32x128xf32>, vector<2x128xf32> -> vector<2x128xf32>
    %281 = arith.addf %279, %280 : vector<2x128xf32>
    %282 = vector.extract_strided_slice %281 {offsets = [0, 0], sizes = [2, 96], strides = [1, 1]} : vector<2x128xf32> to vector<2x96xf32>
    %283 = arith.negf %282 : vector<2x96xf32>
    %284 = math.exp %283 : vector<2x96xf32>
    %cst_53 = arith.constant 1.000000e+00 : f32
    %285 = vector.broadcast %cst_53 : f32 to vector<2x96xf32>
    %286 = arith.addf %285, %284 : vector<2x96xf32>
    %287 = arith.divf %285, %286 : vector<2x96xf32>
    %288 = vector.extract_strided_slice %281 {offsets = [0, 96], sizes = [2, 32], strides = [1, 1]} : vector<2x128xf32> to vector<2x32xf32>
    %289 = math.tanh %288 : vector<2x32xf32>
    %290 = vector.extract_strided_slice %287 {offsets = [0, 0], sizes = [2, 32], strides = [1, 1]} : vector<2x96xf32> to vector<2x32xf32>
    %291 = vector.extract_strided_slice %287 {offsets = [0, 32], sizes = [2, 32], strides = [1, 1]} : vector<2x96xf32> to vector<2x32xf32>
    %292 = vector.extract_strided_slice %287 {offsets = [0, 64], sizes = [2, 32], strides = [1, 1]} : vector<2x96xf32> to vector<2x32xf32>
    %293 = arith.mulf %291, %253 : vector<2x32xf32>
    %294 = arith.mulf %290, %289 : vector<2x32xf32>
    %295 = arith.addf %293, %294 : vector<2x32xf32>
    %296 = math.tanh %295 : vector<2x32xf32>
    %297 = arith.mulf %292, %296 : vector<2x32xf32>
    %298 = tpu.concatenate %297, %274 in 1 : vector<2x32xf32>, vector<2x32xf32> -> vector<2x64xf32>
    %cst_54 = arith.constant dense<0.000000e+00> : vector<2x128xf32>
    %299 = tpu.matmul %298, %26, %cst_54 {dimension_numbers = #tpu.dot_dimension_numbers<[1], [0], [0], [1], [0, 0, 1, 1], [], []>} : vector<2x64xf32>, vector<64x128xf32>, vector<2x128xf32> -> vector<2x128xf32>
    %300 = arith.addf %299, %24 : vector<2x128xf32>
    %301 = vector.extract_strided_slice %300 {offsets = [0, 0], sizes = [2, 96], strides = [1, 1]} : vector<2x128xf32> to vector<2x96xf32>
    %302 = arith.negf %301 : vector<2x96xf32>
    %303 = math.exp %302 : vector<2x96xf32>
    %cst_55 = arith.constant 1.000000e+00 : f32
    %304 = vector.broadcast %cst_55 : f32 to vector<2x96xf32>
    %305 = arith.addf %304, %303 : vector<2x96xf32>
    %306 = arith.divf %304, %305 : vector<2x96xf32>
    %307 = vector.extract_strided_slice %300 {offsets = [0, 96], sizes = [2, 32], strides = [1, 1]} : vector<2x128xf32> to vector<2x32xf32>
    %308 = math.tanh %307 : vector<2x32xf32>
    %309 = vector.extract_strided_slice %306 {offsets = [0, 0], sizes = [2, 32], strides = [1, 1]} : vector<2x96xf32> to vector<2x32xf32>
    %310 = vector.extract_strided_slice %306 {offsets = [0, 32], sizes = [2, 32], strides = [1, 1]} : vector<2x96xf32> to vector<2x32xf32>
    %311 = vector.extract_strided_slice %306 {offsets = [0, 64], sizes = [2, 32], strides = [1, 1]} : vector<2x96xf32> to vector<2x32xf32>
    %312 = arith.mulf %310, %272 : vector<2x32xf32>
    %313 = arith.mulf %309, %308 : vector<2x32xf32>
    %314 = arith.addf %312, %313 : vector<2x32xf32>
    %315 = math.tanh %314 : vector<2x32xf32>
    %316 = arith.mulf %311, %315 : vector<2x32xf32>
    %c0_56 = arith.constant 0 : index
    %c6 = arith.constant 6 : index
    %c0_57 = arith.constant 0 : index
    %317 = vector.load %arg11[%c0_56, %c6, %c0_57] : memref<2x8x32xf32, #tpu.memory_space<vmem>>, vector<2x1x32xf32>
    %318 = vector.shape_cast %317 : vector<2x1x32xf32> to vector<2x32xf32>
    %319 = vector.shape_cast %316 : vector<2x32xf32> to vector<2x1x32xf32>
    tpu.vector_store %arg11[%c0_56, %c6, %c0_57], %319 {strides = array<i32>} : memref<2x8x32xf32, #tpu.memory_space<vmem>>, vector<2x1x32xf32>,
    %320 = vector.extract_strided_slice %21 {offsets = [0, 7, 0], sizes = [2, 1, 128], strides = [1, 1, 1]} : vector<2x8x128xf32> to vector<2x1x128xf32>
    %321 = vector.shape_cast %320 : vector<2x1x128xf32> to vector<2x128xf32>
    %cst_58 = arith.constant dense<0.000000e+00> : vector<2x128xf32>
    %322 = tpu.matmul %297, %25, %cst_58 {dimension_numbers = #tpu.dot_dimension_numbers<[1], [0], [0], [1], [0, 0, 1, 1], [], []>} : vector<2x32xf32>, vector<32x128xf32>, vector<2x128xf32> -> vector<2x128xf32>
    %323 = arith.addf %321, %322 : vector<2x128xf32>
    %324 = vector.extract_strided_slice %323 {offsets = [0, 0], sizes = [2, 96], strides = [1, 1]} : vector<2x128xf32> to vector<2x96xf32>
    %325 = arith.negf %324 : vector<2x96xf32>
    %326 = math.exp %325 : vector<2x96xf32>
    %cst_59 = arith.constant 1.000000e+00 : f32
    %327 = vector.broadcast %cst_59 : f32 to vector<2x96xf32>
    %328 = arith.addf %327, %326 : vector<2x96xf32>
    %329 = arith.divf %327, %328 : vector<2x96xf32>
    %330 = vector.extract_strided_slice %323 {offsets = [0, 96], sizes = [2, 32], strides = [1, 1]} : vector<2x128xf32> to vector<2x32xf32>
    %331 = math.tanh %330 : vector<2x32xf32>
    %332 = vector.extract_strided_slice %329 {offsets = [0, 0], sizes = [2, 32], strides = [1, 1]} : vector<2x96xf32> to vector<2x32xf32>
    %333 = vector.extract_strided_slice %329 {offsets = [0, 32], sizes = [2, 32], strides = [1, 1]} : vector<2x96xf32> to vector<2x32xf32>
    %334 = vector.extract_strided_slice %329 {offsets = [0, 64], sizes = [2, 32], strides = [1, 1]} : vector<2x96xf32> to vector<2x32xf32>
    %335 = arith.mulf %333, %295 : vector<2x32xf32>
    %336 = arith.mulf %332, %331 : vector<2x32xf32>
    %337 = arith.addf %335, %336 : vector<2x32xf32>
    %338 = math.tanh %337 : vector<2x32xf32>
    %339 = arith.mulf %334, %338 : vector<2x32xf32>
    %340 = tpu.concatenate %339, %316 in 1 : vector<2x32xf32>, vector<2x32xf32> -> vector<2x64xf32>
    %cst_60 = arith.constant dense<0.000000e+00> : vector<2x128xf32>
    %341 = tpu.matmul %340, %26, %cst_60 {dimension_numbers = #tpu.dot_dimension_numbers<[1], [0], [0], [1], [0, 0, 1, 1], [], []>} : vector<2x64xf32>, vector<64x128xf32>, vector<2x128xf32> -> vector<2x128xf32>
    %342 = arith.addf %341, %24 : vector<2x128xf32>
    %343 = vector.extract_strided_slice %342 {offsets = [0, 0], sizes = [2, 96], strides = [1, 1]} : vector<2x128xf32> to vector<2x96xf32>
    %344 = arith.negf %343 : vector<2x96xf32>
    %345 = math.exp %344 : vector<2x96xf32>
    %cst_61 = arith.constant 1.000000e+00 : f32
    %346 = vector.broadcast %cst_61 : f32 to vector<2x96xf32>
    %347 = arith.addf %346, %345 : vector<2x96xf32>
    %348 = arith.divf %346, %347 : vector<2x96xf32>
    %349 = vector.extract_strided_slice %342 {offsets = [0, 96], sizes = [2, 32], strides = [1, 1]} : vector<2x128xf32> to vector<2x32xf32>
    %350 = math.tanh %349 : vector<2x32xf32>
    %351 = vector.extract_strided_slice %348 {offsets = [0, 0], sizes = [2, 32], strides = [1, 1]} : vector<2x96xf32> to vector<2x32xf32>
    %352 = vector.extract_strided_slice %348 {offsets = [0, 32], sizes = [2, 32], strides = [1, 1]} : vector<2x96xf32> to vector<2x32xf32>
    %353 = vector.extract_strided_slice %348 {offsets = [0, 64], sizes = [2, 32], strides = [1, 1]} : vector<2x96xf32> to vector<2x32xf32>
    %354 = arith.mulf %352, %314 : vector<2x32xf32>
    %355 = arith.mulf %351, %350 : vector<2x32xf32>
    %356 = arith.addf %354, %355 : vector<2x32xf32>
    %357 = math.tanh %356 : vector<2x32xf32>
    %358 = arith.mulf %353, %357 : vector<2x32xf32>
    %c0_62 = arith.constant 0 : index
    %c7 = arith.constant 7 : index
    %c0_63 = arith.constant 0 : index
    %359 = vector.load %arg11[%c0_62, %c7, %c0_63] : memref<2x8x32xf32, #tpu.memory_space<vmem>>, vector<2x1x32xf32>
    %360 = vector.shape_cast %359 : vector<2x1x32xf32> to vector<2x32xf32>
    %361 = vector.shape_cast %358 : vector<2x32xf32> to vector<2x1x32xf32>
    tpu.vector_store %arg11[%c0_62, %c7, %c0_63], %361 {strides = array<i32>} : memref<2x8x32xf32, #tpu.memory_space<vmem>>, vector<2x1x32xf32>,
    %c0_64 = arith.constant 0 : index
    %c0_65 = arith.constant 0 : index
    %c0_66 = arith.constant 0 : index
    %362 = vector.load %arg11[%c0_64, %c0_65, %c0_66] : memref<2x8x32xf32, #tpu.memory_space<vmem>>, vector<2x8x32xf32>
    %363 = vector.shape_cast %362 : vector<2x8x32xf32> to vector<16x32xf32>
    %c0_67 = arith.constant 0 : index
    %c0_68 = arith.constant 0 : index
    %364 = vector.load %arg8[%c0_67, %c0_68] : memref<32x4xf32, #tpu.memory_space<vmem>>, vector<32x4xf32>
    %cst_69 = arith.constant dense<0.000000e+00> : vector<16x4xf32>
    %365 = tpu.matmul %363, %364, %cst_69 {dimension_numbers = #tpu.dot_dimension_numbers<[1], [0], [0], [1], [0, 0, 1, 1], [], []>} : vector<16x32xf32>, vector<32x4xf32>, vector<16x4xf32> -> vector<16x4xf32>
    %c0_70 = arith.constant 0 : index
    %c0_71 = arith.constant 0 : index
    %366 = vector.load %arg9[%c0_70, %c0_71] : memref<1x4xf32, #tpu.memory_space<vmem>>, vector<1x4xf32>
    %367 = vector.broadcast %366 : vector<1x4xf32> to vector<16x4xf32>
    %368 = arith.addf %365, %367 : vector<16x4xf32>
    %369 = vector.shape_cast %368 : vector<16x4xf32> to vector<2x8x4xf32>
    %c0_72 = arith.constant 0 : index
    %c0_73 = arith.constant 0 : index
    %c0_74 = arith.constant 0 : index
    %370 = vector.load %arg10[%c0_72, %c0_73, %c0_74] : memref<2x8x4xf32, #tpu.memory_space<vmem>>, vector<2x8x4xf32>
    tpu.vector_store %arg10[%c0_72, %c0_73, %c0_74], %369 {strides = array<i32>} : memref<2x8x4xf32, #tpu.memory_space<vmem>>, vector<2x8x4xf32>,
    return
  }
  func.func @transform_0(%arg0: i32) -> (i32, i32, i32) {
    %c0_i32 = arith.constant 0 : i32
    %c0_i32_0 = arith.constant 0 : i32
    %c0_i32_1 = arith.constant 0 : i32
    %c0_i32_2 = arith.constant 0 : i32
    return %c0_i32, %c0_i32_0, %c0_i32_1 : i32, i32, i32
  }
  func.func @transform_1(%arg0: i32) -> i32 {
    %c0_i32 = arith.constant 0 : i32
    %c0_i32_0 = arith.constant 0 : i32
    return %c0_i32 : i32
  }
  func.func @transform_2(%arg0: i32) -> (i32, i32) {
    %c0_i32 = arith.constant 0 : i32
    %c0_i32_0 = arith.constant 0 : i32
    %c0_i32_1 = arith.constant 0 : i32
    return %c0_i32, %c0_i32_0 : i32, i32
  }
  func.func @transform_3(%arg0: i32) -> (i32, i32) {
    %c0_i32 = arith.constant 0 : i32
    %c0_i32_0 = arith.constant 0 : i32
    %c0_i32_1 = arith.constant 0 : i32
    return %c0_i32, %c0_i32_0 : i32, i32
  }
  func.func @transform_4(%arg0: i32) -> (i32, i32) {
    %c0_i32 = arith.constant 0 : i32
    %c0_i32_0 = arith.constant 0 : i32
    %c0_i32_1 = arith.constant 0 : i32
    return %c0_i32, %c0_i32_0 : i32, i32
  }
  func.func @transform_5(%arg0: i32) -> (i32, i32) {
    %c0_i32 = arith.constant 0 : i32
    %c0_i32_0 = arith.constant 0 : i32
    %c0_i32_1 = arith.constant 0 : i32
    return %c0_i32, %c0_i32_0 : i32, i32
  }
  func.func @transform_6(%arg0: i32) -> (i32, i32) {
    %c0_i32 = arith.constant 0 : i32
    %c0_i32_0 = arith.constant 0 : i32
    %c0_i32_1 = arith.constant 0 : i32
    return %c0_i32, %c0_i32_0 : i32, i32
  }
  func.func @transform_7(%arg0: i32) -> (i32, i32) {
    %c0_i32 = arith.constant 0 : i32
    %c0_i32_0 = arith.constant 0 : i32
    %c0_i32_1 = arith.constant 0 : i32
    return %c0_i32, %c0_i32_0 : i32, i32
  }
  func.func @transform_8(%arg0: i32) -> (i32, i32) {
    %c0_i32 = arith.constant 0 : i32
    %c0_i32_0 = arith.constant 0 : i32
    %c0_i32_1 = arith.constant 0 : i32
    return %c0_i32, %c0_i32_0 : i32, i32
  }
  func.func @transform_9(%arg0: i32) -> (i32, i32, i32) {
    %c0_i32 = arith.constant 0 : i32
    %c0_i32_0 = arith.constant 0 : i32
    %c0_i32_1 = arith.constant 0 : i32
    %c0_i32_2 = arith.constant 0 : i32
    return %c0_i32, %c0_i32_0, %c0_i32_1 : i32, i32, i32
  }
}

</mosaic_0001>

<llo_original>
// kernel: diffusion_forward.1
$region0: #{diffusion_forward.1}
  #allocation0 [shape = 'u32[]', space=smem, size = 0x4, offset = 0x4, fixed_abs, tag = 'smem constant byte address 0x4 - core index']
  #allocation1 [shape = 'u32[72,128]{1,0:T(1,128)}', space=vmem, size = 0x9000, scoped, tag = 'internal scratch']
  #allocation2 [shape = 'f32[2,8,32]{2,1,0:T(8,128)}', space=vmem, size = 0x2000, scoped, tag = 'scratch operand']
  %s0 = inlined_call_operand.vmem [shape: f32[2,8,4], index: 0, kind: input, shape index: {}]
  %s1 = inlined_call_operand.vmem [shape: s32[2], index: 1, kind: input, shape index: {}]
  %s2 = inlined_call_operand.vmem [shape: f32[16,128], index: 2, kind: input, shape index: {}]
  %s3 = inlined_call_operand.vmem [shape: f32[4,128], index: 3, kind: input, shape index: {}]
  %s4 = inlined_call_operand.vmem [shape: f32[32,128], index: 4, kind: input, shape index: {}]
  %s5 = inlined_call_operand.hbm [shape: f32[64,128], index: 5, kind: input, shape index: {}]
  %s6 = inlined_call_operand.vmem [shape: f32[1,128], index: 6, kind: input, shape index: {}]
  %s7 = inlined_call_operand.vmem [shape: f32[32,4], index: 7, kind: input, shape index: {}]
  %s8 = inlined_call_operand.vmem [shape: f32[1,4], index: 8, kind: input, shape index: {}]
  %s9 = inlined_call_operand.vmem [shape: f32[2,8,4], index: 9, kind: output, shape index: {}]
  %s10 = sld [smem:[#allocation0]]
  $region54: #{diffusion_forward.1} parent=0
    _
  %s12 = ssub.s32 1, %s10
  %s13 = scalar_select 0, %s12, %s10
  $region1: #{diffusion_forward.1} parent=0
    #allocation3 [shape = 'u8[512]{0}', space=smem, size = 0x200, scoped, tag = 'input window, operand 1, single buffered']
    #allocation4 [shape = 's32[1]{0}', space=sflag, size = 0x4, scoped, tag = 'scoped memory for diffusion_forward.1']
    #allocation5 [shape = 's32[1]{0}', space=sflag, size = 0x4, scoped, tag = 'scoped memory for diffusion_forward.1']
    #allocation6 [shape = 'u8[32768]{0}', space=vmem, size = 0x8000, scoped, tag = 'input window, operand 5, single buffered']
    %14 = vsyncpa [#allocation5], 0
    %15 = vsyncpa [#allocation4], 0
    // Predicated region
    $region2: #{diffusion_forward.1} parent=1 // pred_check
      _
    $region3: #{diffusion_forward.1} parent=1 // pred_check_branch
      %17 = sbr.rel (0) target = $region5
    $region4: #{diffusion_forward.1} parent=1 // pred_region
      _
    $region5: #{diffusion_forward.1} parent=1 // pred_fallthru
      _
    // Predicated region
    $region6: #{diffusion_forward.1} parent=1 // pred_check
      _
    $region7: #{diffusion_forward.1} parent=1 // pred_check_branch
      %19 = sbr.rel (0) target = $region9
    $region8: #{diffusion_forward.1} parent=1 // pred_region
      %21 = vsyncadd [#allocation5], 0
      %s23 = sshll.u32 %s1, 4
      %s24 = int_to_ptr.vmem [resolvable:$true] %s23
      %26 = dma.vmem_to_smem %s24, 16, [#allocation3], [#allocation5]
    $region9: #{diffusion_forward.1} parent=1 // pred_fallthru
      _
    // Predicated region
    $region10: #{diffusion_forward.1} parent=1 // pred_check
      _
    $region11: #{diffusion_forward.1} parent=1 // pred_check_branch
      %28 = sbr.rel (0) target = $region13
    $region12: #{diffusion_forward.1} parent=1 // pred_region
      _
    $region13: #{diffusion_forward.1} parent=1 // pred_fallthru
      _
    // Predicated region
    $region14: #{diffusion_forward.1} parent=1 // pred_check
      _
    $region15: #{diffusion_forward.1} parent=1 // pred_check_branch
      %30 = sbr.rel (0) target = $region17
    $region16: #{diffusion_forward.1} parent=1 // pred_region
      _
    $region17: #{diffusion_forward.1} parent=1 // pred_fallthru
      _
    // Predicated region
    $region18: #{diffusion_forward.1} parent=1 // pred_check
      _
    $region19: #{diffusion_forward.1} parent=1 // pred_check_branch
      %32 = sbr.rel (0) target = $region21
    $region20: #{diffusion_forward.1} parent=1 // pred_region
      _
    $region21: #{diffusion_forward.1} parent=1 // pred_fallthru
      _
    // Predicated region
    $region22: #{diffusion_forward.1} parent=1 // pred_check
      _
    $region23: #{diffusion_forward.1} parent=1 // pred_check_branch
      %34 = sbr.rel (0) target = $region25
    $region24: #{diffusion_forward.1} parent=1 // pred_region
      %36 = vsyncadd [#allocation4], 0
      %s37 = sshll.u32 %s5, 4
      %s38 = int_to_ptr.hbm [resolvable:$true] %s37
      %s39 = sshll.u32 [#allocation6], 4
      %s40 = int_to_ptr.vmem [resolvable:$true] %s39
      %45 = dma.hbm_to_vmem [thread:$0]  %s38, 1024, %s40, [#allocation4], 128, 128, 8
    $region25: #{diffusion_forward.1} parent=1 // pred_fallthru
      _
    // Predicated region
    $region26: #{diffusion_forward.1} parent=1 // pred_check
      _
    $region27: #{diffusion_forward.1} parent=1 // pred_check_branch
      %47 = sbr.rel (0) target = $region29
    $region28: #{diffusion_forward.1} parent=1 // pred_region
      _
    $region29: #{diffusion_forward.1} parent=1 // pred_fallthru
      _
    // Predicated region
    $region30: #{diffusion_forward.1} parent=1 // pred_check
      _
    $region31: #{diffusion_forward.1} parent=1 // pred_check_branch
      %49 = sbr.rel (0) target = $region33
    $region32: #{diffusion_forward.1} parent=1 // pred_region
      _
    $region33: #{diffusion_forward.1} parent=1 // pred_fallthru
      _
    // Predicated region
    $region34: #{diffusion_forward.1} parent=1 // pred_check
      _
    $region35: #{diffusion_forward.1} parent=1 // pred_check_branch
      %51 = sbr.rel (0) target = $region37
    $region36: #{diffusion_forward.1} parent=1 // pred_region
      _
    $region37: #{diffusion_forward.1} parent=1 // pred_fallthru
      _
    // Predicated region
    $region38: #{diffusion_forward.1} parent=1 // pred_check
      _
    $region39: #{diffusion_forward.1} parent=1 // pred_check_branch
      %53 = sbr.rel (0) target = $region41
    $region40: #{diffusion_forward.1} parent=1 // pred_region
      %55 = dma.done [#allocation5], 16
    $region41: #{diffusion_forward.1} parent=1 // pred_fallthru
      _
    // Predicated region
    $region42: #{diffusion_forward.1} parent=1 // pred_check
      _
    $region43: #{diffusion_forward.1} parent=1 // pred_check_branch
      %57 = sbr.rel (0) target = $region45
    $region44: #{diffusion_forward.1} parent=1 // pred_region
      %59 = dma.done [#allocation4], 1024
    $region45: #{diffusion_forward.1} parent=1 // pred_fallthru
      _
    %60 = sfence
    %v61 = vlaneseq
    %v62 = vand.u32 %v61, 127
    %s63 = sld [smem:[#allocation3]]
    %v64 = vstv %s63
    %vm65 = vcmp.eq.s32.totalorder %v62, %v64
    %v66 = vsel %vm65, 1, 0
    %v67 = vcvt.s32.f32 %v66
    %s68 = sld [smem:[#allocation3 + $0x1]]
    %v69 = vstv %s68
    %vm70 = vcmp.eq.s32.totalorder %v62, %v69
    %v71 = vsel %vm70, 1, 0
    %v72 = vcvt.s32.f32 %v71
    %vm73 = vcmask 1040384
    %v74 = vsel %vm73, %v67, %v72
    %v75 = vld [vmem:[%s2] sm:$0xff]
    %v76 = vld [vmem:[%s2 + $0x8] sm:$0xff]
    %vm77 = vcmask 130048
    %v79 = vsel %vm77, %v74, 0
    %81 = vmatpush.msra.mxu0 0.0
    %82 = vmatpush.msra.mxu0 0.0
    %83 = vmatpush.msra.mxu0 0.0
    %84 = vmatpush.msra.mxu0 0.0
    %85 = vmatpush.msra.mxu0 0.0
    %86 = vmatpush.msra.mxu0 0.0
    %87 = vmatpush.msra.mxu0 0.0
    %88 = vmatpush.msra.mxu0 0.0
    %89 = vmatpush.msra.mxu0 0.0
    %90 = vmatpush.msra.mxu0 0.0
    %91 = vmatpush.msra.mxu0 0.0
    %92 = vmatpush.msra.mxu0 0.0
    %93 = vmatpush.msra.mxu0 0.0
    %94 = vmatpush.msra.mxu0 0.0
    %95 = vmatpush.msra.mxu0 %v76
    %96 = vmatpush.msra.mxu0 %v75
    %97 = vmatmul.f32.gmra.mxu0 %v79
    %v98 = vpop.f32.mrf.mxu0
    %v99 = vadd.f32 0.0, %v98
    %100 = vdwg.mxu0
    %v101 = vld [vmem:[%s0] sm:$0xff]
    %v102 = vld [vmem:[%s0 + $0x8] sm:$0xff]
    %v103 = vld [vmem:[%s3] sm:$0xf]
    %vm104 = vcmask 31744
    %v106 = vsel %vm104, %v101, 0
    %v109 = vsel %vm104, %v102, 0
    %vm111 = vcmask 1043456
    %v113 = vsel %vm111, %v103, 0
    %115 = vmatpush.msra.mxu0 0.0
    %116 = vmatpush.msra.mxu0 0.0
    %117 = vmatpush.msra.mxu0 0.0
    %118 = vmatpush.msra.mxu0 0.0
    %119 = vmatpush.msra.mxu0 0.0
    %120 = vmatpush.msra.mxu0 0.0
    %121 = vmatpush.msra.mxu0 0.0
    %122 = vmatpush.msra.mxu0 0.0
    %123 = vmatpush.msra.mxu0 0.0
    %124 = vmatpush.msra.mxu0 0.0
    %125 = vmatpush.msra.mxu0 0.0
    %126 = vmatpush.msra.mxu0 0.0
    %127 = vmatpush.msra.mxu0 0.0
    %128 = vmatpush.msra.mxu0 0.0
    %129 = vmatpush.msra.mxu0 0.0
    %130 = vmatpush.msra.mxu0 %v113
    %131 = vmatmul.f32.gmra.mxu0 %v106
    %v132 = vpop.f32.mrf.mxu0
    %v133 = vadd.f32 0.0, %v132
    %134 = vmatmul.f32.gmra.mxu0 %v109
    %v135 = vpop.f32.mrf.mxu0
    %v136 = vadd.f32 0.0, %v135
    %137 = vdwg.mxu0
    %v139 = vrot.slane %v99, 1
    %v140 = vperm.slane %v99, 0
    %v141 = vperm.slane %v139, 0
    %v144 = vadd.f32 %v133, %v140
    %v145 = vadd.f32 %v136, %v141
    %v146 = vld [vmem:[%s6] sm:$0x1]
    %v148 = vperm.slane %v146, 0
    %v150 = vld [vmem:[%s4] sm:$0xff]
    %v151 = vld [vmem:[%s4 + $0x8] sm:$0xff]
    %v152 = vld [vmem:[%s4 + $0x10] sm:$0xff]
    %v153 = vld [vmem:[%s4 + $0x18] sm:$0xff]
    %v154 = vld [vmem:[#allocation6] sm:$0xff]
    %v155 = vld [vmem:[#allocation6 + $0x8] sm:$0xff]
    %v156 = vld [vmem:[#allocation6 + $0x10] sm:$0xff]
    %v157 = vld [vmem:[#allocation6 + $0x18] sm:$0xff]
    %v158 = vld [vmem:[#allocation6 + $0x20] sm:$0xff]
    %v159 = vld [vmem:[#allocation6 + $0x28] sm:$0xff]
    %v160 = vld [vmem:[#allocation6 + $0x30] sm:$0xff]
    %v161 = vld [vmem:[#allocation6 + $0x38] sm:$0xff]
    %v162 = vxor.u32 %v144, 2147483648
    %v163 = vxor.u32 %v145, 2147483648
    %v164 = vmul.f32 %v162, 1.442695
    %v165 = vpow.pop %v164
    %v166 = vmul.f32 %v163, 1.442695
    %v167 = vpow.pop %v166
    %v168 = vadd.f32 %v165, 1.0
    %v169 = vadd.f32 %v167, 1.0
    %v170 = vrcp.pop %v168
    %v171 = vmul.f32 %v168, %v170
    %v172 = vsub.f32 1.0, %v171
    %v173 = vmul.f32 %v170, %v172
    %v174 = vadd.f32 %v170, %v173
    %vm175 = vweird.f32 %v168
    %vm176 = vweird.f32 %v170
    %vm177 = vmor %vm175, %vm176
    %v178 = vsel %vm177, %v170, %v174
    %v179 = vand.u32 2147483647, %v168
    %vm180 = vcmp.eq.f32.partialorder %v179, 8.507059e+37
    %v181 = vand.u32 %v168, 2147483648
    %v182 = vor.u32 1.1754944e-38, %v181
    %v183 = vsel %vm180, %v182, %v178
    %v184 = vmul.f32 1.0, %v183
    %v185 = vrcp.pop %v169
    %v186 = vmul.f32 %v169, %v185
    %v187 = vsub.f32 1.0, %v186
    %v188 = vmul.f32 %v185, %v187
    %v189 = vadd.f32 %v185, %v188
    %vm190 = vweird.f32 %v169
    %vm191 = vweird.f32 %v185
    %vm192 = vmor %vm190, %vm191
    %v193 = vsel %vm192, %v185, %v189
    %v194 = vand.u32 2147483647, %v169
    %vm195 = vcmp.eq.f32.partialorder %v194, 8.507059e+37
    %v196 = vand.u32 %v169, 2147483648
    %v197 = vor.u32 1.1754944e-38, %v196
    %v198 = vsel %vm195, %v197, %v193
    %v199 = vmul.f32 1.0, %v198
    %v200 = vtanh.pop %v144
    %v201 = vtanh.pop %v145
    %v202 = vmul.f32 %v184, 0.0
    %v203 = vmul.f32 %v199, 0.0
    %206 = vrot.lane.b32.xlu0 %v200, 32
    %v207 = vpop.permute.xlu0 %206
    %208 = vrot.lane.b32.xlu0 %v201, 32
    %v209 = vpop.permute.xlu0 %208
    %v212 = vmul.f32 %v184, %v207
    %v213 = vmul.f32 %v199, %v209
    %216 = vrot.lane.b32.xlu0 %v212, 32
    %v217 = vpop.permute.xlu0 %216
    %218 = vrot.lane.b32.xlu0 %v213, 32
    %v219 = vpop.permute.xlu0 %218
    %v222 = vadd.f32 %v202, %v217
    %v223 = vadd.f32 %v203, %v219
    %v224 = vtanh.pop %v222
    %v225 = vtanh.pop %v223
    %228 = vrot.lane.b32.xlu0 %v224, 32
    %v229 = vpop.permute.xlu0 %228
    %230 = vrot.lane.b32.xlu0 %v225, 32
    %v231 = vpop.permute.xlu0 %230
    %v234 = vmul.f32 %v184, %v229
    %v235 = vmul.f32 %v199, %v231
    %v238 = vrot.slane %v235, 7
    %vm239 = vcmask 1041409
    %v240 = vsel %vm239, %v238, %v234
    %241 = vrot.lane.b32.xlu0 %v240, 64
    %v242 = vpop.permute.xlu0 %241
    %vm244 = vcmask 261120
    %v245 = vsel %vm244, %v242, 0.0
    %vm246 = vcmask 523264
    %v248 = vsel %vm246, %v245, 0
    %250 = vmatpush.msra.mxu0 0.0
    %251 = vmatpush.msra.mxu0 0.0
    %252 = vmatpush.msra.mxu0 0.0
    %253 = vmatpush.msra.mxu0 0.0
    %254 = vmatpush.msra.mxu0 0.0
    %255 = vmatpush.msra.mxu0 0.0
    %256 = vmatpush.msra.mxu0 0.0
    %257 = vmatpush.msra.mxu0 0.0
    %258 = vmatpush.msra.mxu0 %v161
    %259 = vmatpush.msra.mxu0 %v160
    %260 = vmatpush.msra.mxu0 %v159
    %261 = vmatpush.msra.mxu0 %v158
    %262 = vmatpush.msra.mxu0 %v157
    %263 = vmatpush.msra.mxu0 %v156
    %264 = vmatpush.msra.mxu0 %v155
    %265 = vmatpush.msra.mxu0 %v154
    %266 = vmatmul.f32.gmra.mxu0 %v248
    %v267 = vpop.f32.mrf.mxu0
    %v268 = vadd.f32 %v148, %v267
    %269 = vdwg.mxu0
    %v270 = vxor.u32 %v268, 2147483648
    %v271 = vmul.f32 %v270, 1.442695
    %v272 = vpow.pop %v271
    %v273 = vadd.f32 %v272, 1.0
    %v274 = vrcp.pop %v273
    %v275 = vmul.f32 %v273, %v274
    %v276 = vsub.f32 1.0, %v275
    %v277 = vmul.f32 %v274, %v276
    %v278 = vadd.f32 %v274, %v277
    %vm279 = vweird.f32 %v273
    %vm280 = vweird.f32 %v274
    %vm281 = vmor %vm279, %vm280
    %v282 = vsel %vm281, %v274, %v278
    %v283 = vand.u32 2147483647, %v273
    %vm284 = vcmp.eq.f32.partialorder %v283, 8.507059e+37
    %v285 = vand.u32 %v273, 2147483648
    %v286 = vor.u32 1.1754944e-38, %v285
    %v287 = vsel %vm284, %v286, %v282
    %v288 = vmul.f32 1.0, %v287
    %v289 = vtanh.pop %v268
    %v290 = vmul.f32 %v288, 0.0
    %292 = vrot.lane.b32.xlu0 %v289, 32
    %v293 = vpop.permute.xlu0 %292
    %v295 = vmul.f32 %v288, %v293
    %297 = vrot.lane.b32.xlu0 %v295, 32
    %v298 = vpop.permute.xlu0 %297
    %v300 = vadd.f32 %v290, %v298
    %v301 = vtanh.pop %v300
    %303 = vrot.lane.b32.xlu0 %v301, 32
    %v304 = vpop.permute.xlu0 %303
    %v306 = vmul.f32 %v288, %v304
    %v308 = vrot.slane %v306, 1
    %v309 = vperm.slane %v306, 0
    %v310 = vperm.slane %v308, 0
    %311 = vrot.lane.b32.xlu0 %v309, 64
    %v312 = vpop.permute.xlu0 %311
    %313 = vrot.lane.b32.xlu0 %v310, 64
    %v314 = vpop.permute.xlu0 %313
    %vm317 = vcmask 253952
    %318 = vst.msk [vmem:[#allocation2] sm:$0x1] %vm317, %v312
    %319 = vst.msk [vmem:[#allocation2 + $0x8] sm:$0x1] %vm317, %v314
    %v320 = vsel %vm244, %v242, 0
    %322 = vmatpush.msra.mxu0 0.0
    %323 = vmatpush.msra.mxu0 0.0
    %324 = vmatpush.msra.mxu0 0.0
    %325 = vmatpush.msra.mxu0 0.0
    %326 = vmatpush.msra.mxu0 0.0
    %327 = vmatpush.msra.mxu0 0.0
    %328 = vmatpush.msra.mxu0 0.0
    %329 = vmatpush.msra.mxu0 0.0
    %330 = vmatpush.msra.mxu0 0.0
    %331 = vmatpush.msra.mxu0 0.0
    %332 = vmatpush.msra.mxu0 0.0
    %333 = vmatpush.msra.mxu0 0.0
    %334 = vmatpush.msra.mxu0 %v153
    %335 = vmatpush.msra.mxu0 %v152
    %336 = vmatpush.msra.mxu0 %v151
    %337 = vmatpush.msra.mxu0 %v150
    %338 = vmatmul.f32.gmra.mxu0 %v320
    %v339 = vpop.f32.mrf.mxu0
    %v340 = vadd.f32 0.0, %v339
    %341 = vdwg.mxu0
    %v343 = vrot.slane %v340, 7
    %v346 = vadd.f32 %v144, %v343
    %v347 = vadd.f32 %v145, %v340
    %v348 = vxor.u32 %v346, 2147483648
    %v349 = vxor.u32 %v347, 2147483648
    %v350 = vmul.f32 %v348, 1.442695
    %v351 = vpow.pop %v350
    %v352 = vmul.f32 %v349, 1.442695
    %v353 = vpow.pop %v352
    %v354 = vadd.f32 %v351, 1.0
    %v355 = vadd.f32 %v353, 1.0
    %v356 = vrcp.pop %v354
    %v357 = vmul.f32 %v354, %v356
    %v358 = vsub.f32 1.0, %v357
    %v359 = vmul.f32 %v356, %v358
    %v360 = vadd.f32 %v356, %v359
    %vm361 = vweird.f32 %v354
    %vm362 = vweird.f32 %v356
    %vm363 = vmor %vm361, %vm362
    %v364 = vsel %vm363, %v356, %v360
    %v365 = vand.u32 2147483647, %v354
    %vm366 = vcmp.eq.f32.partialorder %v365, 8.507059e+37
    %v367 = vand.u32 %v354, 2147483648
    %v368 = vor.u32 1.1754944e-38, %v367
    %v369 = vsel %vm366, %v368, %v364
    %v370 = vmul.f32 1.0, %v369
    %v371 = vrcp.pop %v355
    %v372 = vmul.f32 %v355, %v371
    %v373 = vsub.f32 1.0, %v372
    %v374 = vmul.f32 %v371, %v373
    %v375 = vadd.f32 %v371, %v374
    %vm376 = vweird.f32 %v355
    %vm377 = vweird.f32 %v371
    %vm378 = vmor %vm376, %vm377
    %v379 = vsel %vm378, %v371, %v375
    %v380 = vand.u32 2147483647, %v355
    %vm381 = vcmp.eq.f32.partialorder %v380, 8.507059e+37
    %v382 = vand.u32 %v355, 2147483648
    %v383 = vor.u32 1.1754944e-38, %v382
    %v384 = vsel %vm381, %v383, %v379
    %v385 = vmul.f32 1.0, %v384
    %v386 = vtanh.pop %v346
    %v387 = vtanh.pop %v347
    %v390 = vrot.slane %v222, 7
    %v391 = vrot.slane %v223, 7
    %v394 = vmul.f32 %v370, %v390
    %v395 = vmul.f32 %v385, %v391
    %398 = vrot.lane.b32.xlu0 %v386, 32
    %v399 = vpop.permute.xlu0 %398
    %400 = vrot.lane.b32.xlu0 %v387, 32
    %v401 = vpop.permute.xlu0 %400
    %v404 = vmul.f32 %v370, %v399
    %v405 = vmul.f32 %v385, %v401
    %408 = vrot.lane.b32.xlu0 %v404, 32
    %v409 = vpop.permute.xlu0 %408
    %410 = vrot.lane.b32.xlu0 %v405, 32
    %v411 = vpop.permute.xlu0 %410
    %v414 = vadd.f32 %v394, %v409
    %v415 = vadd.f32 %v395, %v411
    %v416 = vtanh.pop %v414
    %v417 = vtanh.pop %v415
    %420 = vrot.lane.b32.xlu0 %v416, 32
    %v421 = vpop.permute.xlu0 %420
    %422 = vrot.lane.b32.xlu0 %v417, 32
    %v423 = vpop.permute.xlu0 %422
    %v426 = vmul.f32 %v370, %v421
    %v427 = vmul.f32 %v385, %v423
    %v430 = vrot.slane %v427, 7
    %vm431 = vcmask 1042434
    %v432 = vsel %vm431, %v430, %v426
    %433 = vrot.lane.b32.xlu0 %v432, 64
    %v434 = vpop.permute.xlu0 %433
    %v436 = vrot.slane %v306, 7
    %437 = vrot.lane.b32.xlu0 %v436, 96
    %v438 = vpop.permute.xlu0 %437
    %v440 = vsel %vm244, %v434, %v438
    %v442 = vrot.slane %v440, 1
    %v443 = vsel %vm246, %v442, 0
    %445 = vmatpush.msra.mxu0 0.0
    %446 = vmatpush.msra.mxu0 0.0
    %447 = vmatpush.msra.mxu0 0.0
    %448 = vmatpush.msra.mxu0 0.0
    %449 = vmatpush.msra.mxu0 0.0
    %450 = vmatpush.msra.mxu0 0.0
    %451 = vmatpush.msra.mxu0 0.0
    %452 = vmatpush.msra.mxu0 0.0
    %453 = vmatpush.msra.mxu0 %v161
    %454 = vmatpush.msra.mxu0 %v160
    %455 = vmatpush.msra.mxu0 %v159
    %456 = vmatpush.msra.mxu0 %v158
    %457 = vmatpush.msra.mxu0 %v157
    %458 = vmatpush.msra.mxu0 %v156
    %459 = vmatpush.msra.mxu0 %v155
    %460 = vmatpush.msra.mxu0 %v154
    %461 = vmatmul.f32.gmra.mxu0 %v443
    %v462 = vpop.f32.mrf.mxu0
    %v463 = vadd.f32 %v148, %v462
    %464 = vdwg.mxu0
    %v465 = vxor.u32 %v463, 2147483648
    %v466 = vmul.f32 %v465, 1.442695
    %v467 = vpow.pop %v466
    %v468 = vadd.f32 %v467, 1.0
    %v469 = vrcp.pop %v468
    %v470 = vmul.f32 %v468, %v469
    %v471 = vsub.f32 1.0, %v470
    %v472 = vmul.f32 %v469, %v471
    %v473 = vadd.f32 %v469, %v472
    %vm474 = vweird.f32 %v468
    %vm475 = vweird.f32 %v469
    %vm476 = vmor %vm474, %vm475
    %v477 = vsel %vm476, %v469, %v473
    %v478 = vand.u32 2147483647, %v468
    %vm479 = vcmp.eq.f32.partialorder %v478, 8.507059e+37
    %v480 = vand.u32 %v468, 2147483648
    %v481 = vor.u32 1.1754944e-38, %v480
    %v482 = vsel %vm479, %v481, %v477
    %v483 = vmul.f32 1.0, %v482
    %v484 = vtanh.pop %v463
    %v485 = vmul.f32 %v483, %v300
    %487 = vrot.lane.b32.xlu0 %v484, 32
    %v488 = vpop.permute.xlu0 %487
    %v490 = vmul.f32 %v483, %v488
    %492 = vrot.lane.b32.xlu0 %v490, 32
    %v493 = vpop.permute.xlu0 %492
    %v495 = vadd.f32 %v485, %v493
    %v496 = vtanh.pop %v495
    %498 = vrot.lane.b32.xlu0 %v496, 32
    %v499 = vpop.permute.xlu0 %498
    %v501 = vmul.f32 %v483, %v499
    %v503 = vrot.slane %v501, 1
    %v504 = vperm.slane %v501, 0
    %v505 = vperm.slane %v503, 0
    %506 = vrot.lane.b32.xlu0 %v504, 64
    %v507 = vpop.permute.xlu0 %506
    %508 = vrot.lane.b32.xlu0 %v505, 64
    %v509 = vpop.permute.xlu0 %508
    %512 = vst.msk [vmem:[#allocation2 + $0x1] sm:$0x1] %vm317, %v507
    %513 = vst.msk [vmem:[#allocation2 + $0x9] sm:$0x1] %vm317, %v509
    %v514 = vrot.slane %v426, 1
    %v515 = vsel %vm239, %v427, %v514
    %516 = vrot.lane.b32.xlu0 %v515, 64
    %v517 = vpop.permute.xlu0 %516
    %v518 = vsel %vm244, %v517, 0
    %520 = vmatpush.msra.mxu0 0.0
    %521 = vmatpush.msra.mxu0 0.0
    %522 = vmatpush.msra.mxu0 0.0
    %523 = vmatpush.msra.mxu0 0.0
    %524 = vmatpush.msra.mxu0 0.0
    %525 = vmatpush.msra.mxu0 0.0
    %526 = vmatpush.msra.mxu0 0.0
    %527 = vmatpush.msra.mxu0 0.0
    %528 = vmatpush.msra.mxu0 0.0
    %529 = vmatpush.msra.mxu0 0.0
    %530 = vmatpush.msra.mxu0 0.0
    %531 = vmatpush.msra.mxu0 0.0
    %532 = vmatpush.msra.mxu0 %v153
    %533 = vmatpush.msra.mxu0 %v152
    %534 = vmatpush.msra.mxu0 %v151
    %535 = vmatpush.msra.mxu0 %v150
    %536 = vmatmul.f32.gmra.mxu0 %v518
    %v537 = vpop.f32.mrf.mxu0
    %v538 = vadd.f32 0.0, %v537
    %539 = vdwg.mxu0
    %v541 = vrot.slane %v538, 6
    %v542 = vrot.slane %v538, 7
    %v545 = vadd.f32 %v144, %v541
    %v546 = vadd.f32 %v145, %v542
    %v547 = vxor.u32 %v545, 2147483648
    %v548 = vxor.u32 %v546, 2147483648
    %v549 = vmul.f32 %v547, 1.442695
    %v550 = vpow.pop %v549
    %v551 = vmul.f32 %v548, 1.442695
    %v552 = vpow.pop %v551
    %v553 = vadd.f32 %v550, 1.0
    %v554 = vadd.f32 %v552, 1.0
    %v555 = vrcp.pop %v553
    %v556 = vmul.f32 %v553, %v555
    %v557 = vsub.f32 1.0, %v556
    %v558 = vmul.f32 %v555, %v557
    %v559 = vadd.f32 %v555, %v558
    %vm560 = vweird.f32 %v553
    %vm561 = vweird.f32 %v555
    %vm562 = vmor %vm560, %vm561
    %v563 = vsel %vm562, %v555, %v559
    %v564 = vand.u32 2147483647, %v553
    %vm565 = vcmp.eq.f32.partialorder %v564, 8.507059e+37
    %v566 = vand.u32 %v553, 2147483648
    %v567 = vor.u32 1.1754944e-38, %v566
    %v568 = vsel %vm565, %v567, %v563
    %v569 = vmul.f32 1.0, %v568
    %v570 = vrcp.pop %v554
    %v571 = vmul.f32 %v554, %v570
    %v572 = vsub.f32 1.0, %v571
    %v573 = vmul.f32 %v570, %v572
    %v574 = vadd.f32 %v570, %v573
    %vm575 = vweird.f32 %v554
    %vm576 = vweird.f32 %v570
    %vm577 = vmor %vm575, %vm576
    %v578 = vsel %vm577, %v570, %v574
    %v579 = vand.u32 2147483647, %v554
    %vm580 = vcmp.eq.f32.partialorder %v579, 8.507059e+37
    %v581 = vand.u32 %v554, 2147483648
    %v582 = vor.u32 1.1754944e-38, %v581
    %v583 = vsel %vm580, %v582, %v578
    %v584 = vmul.f32 1.0, %v583
    %v585 = vtanh.pop %v545
    %v586 = vtanh.pop %v546
    %v589 = vrot.slane %v414, 7
    %v590 = vrot.slane %v415, 7
    %v593 = vmul.f32 %v569, %v589
    %v594 = vmul.f32 %v584, %v590
    %597 = vrot.lane.b32.xlu0 %v585, 32
    %v598 = vpop.permute.xlu0 %597
    %599 = vrot.lane.b32.xlu0 %v586, 32
    %v600 = vpop.permute.xlu0 %599
    %v603 = vmul.f32 %v569, %v598
    %v604 = vmul.f32 %v584, %v600
    %607 = vrot.lane.b32.xlu0 %v603, 32
    %v608 = vpop.permute.xlu0 %607
    %609 = vrot.lane.b32.xlu0 %v604, 32
    %v610 = vpop.permute.xlu0 %609
    %v613 = vadd.f32 %v593, %v608
    %v614 = vadd.f32 %v594, %v610
    %v615 = vtanh.pop %v613
    %v616 = vtanh.pop %v614
    %619 = vrot.lane.b32.xlu0 %v615, 32
    %v620 = vpop.permute.xlu0 %619
    %621 = vrot.lane.b32.xlu0 %v616, 32
    %v622 = vpop.permute.xlu0 %621
    %v625 = vmul.f32 %v569, %v620
    %v626 = vmul.f32 %v584, %v622
    %v629 = vrot.slane %v626, 7
    %vm630 = vcmask 1043459
    %v631 = vsel %vm630, %v629, %v625
    %632 = vrot.lane.b32.xlu0 %v631, 64
    %v633 = vpop.permute.xlu0 %632
    %v635 = vrot.slane %v501, 6
    %636 = vrot.lane.b32.xlu0 %v635, 96
    %v637 = vpop.permute.xlu0 %636
    %v639 = vsel %vm244, %v633, %v637
    %v641 = vrot.slane %v639, 2
    %v642 = vsel %vm246, %v641, 0
    %644 = vmatpush.msra.mxu0 0.0
    %645 = vmatpush.msra.mxu0 0.0
    %646 = vmatpush.msra.mxu0 0.0
    %647 = vmatpush.msra.mxu0 0.0
    %648 = vmatpush.msra.mxu0 0.0
    %649 = vmatpush.msra.mxu0 0.0
    %650 = vmatpush.msra.mxu0 0.0
    %651 = vmatpush.msra.mxu0 0.0
    %652 = vmatpush.msra.mxu0 %v161
    %653 = vmatpush.msra.mxu0 %v160
    %654 = vmatpush.msra.mxu0 %v159
    %655 = vmatpush.msra.mxu0 %v158
    %656 = vmatpush.msra.mxu0 %v157
    %657 = vmatpush.msra.mxu0 %v156
    %658 = vmatpush.msra.mxu0 %v155
    %659 = vmatpush.msra.mxu0 %v154
    %660 = vmatmul.f32.gmra.mxu0 %v642
    %v661 = vpop.f32.mrf.mxu0
    %v662 = vadd.f32 %v148, %v661
    %663 = vdwg.mxu0
    %v664 = vxor.u32 %v662, 2147483648
    %v665 = vmul.f32 %v664, 1.442695
    %v666 = vpow.pop %v665
    %v667 = vadd.f32 %v666, 1.0
    %v668 = vrcp.pop %v667
    %v669 = vmul.f32 %v667, %v668
    %v670 = vsub.f32 1.0, %v669
    %v671 = vmul.f32 %v668, %v670
    %v672 = vadd.f32 %v668, %v671
    %vm673 = vweird.f32 %v667
    %vm674 = vweird.f32 %v668
    %vm675 = vmor %vm673, %vm674
    %v676 = vsel %vm675, %v668, %v672
    %v677 = vand.u32 2147483647, %v667
    %vm678 = vcmp.eq.f32.partialorder %v677, 8.507059e+37
    %v679 = vand.u32 %v667, 2147483648
    %v680 = vor.u32 1.1754944e-38, %v679
    %v681 = vsel %vm678, %v680, %v676
    %v682 = vmul.f32 1.0, %v681
    %v683 = vtanh.pop %v662
    %v684 = vmul.f32 %v682, %v495
    %686 = vrot.lane.b32.xlu0 %v683, 32
    %v687 = vpop.permute.xlu0 %686
    %v689 = vmul.f32 %v682, %v687
    %691 = vrot.lane.b32.xlu0 %v689, 32
    %v692 = vpop.permute.xlu0 %691
    %v694 = vadd.f32 %v684, %v692
    %v695 = vtanh.pop %v694
    %697 = vrot.lane.b32.xlu0 %v695, 32
    %v698 = vpop.permute.xlu0 %697
    %v700 = vmul.f32 %v682, %v698
    %v702 = vrot.slane %v700, 1
    %v703 = vperm.slane %v700, 0
    %v704 = vperm.slane %v702, 0
    %705 = vrot.lane.b32.xlu0 %v703, 64
    %v706 = vpop.permute.xlu0 %705
    %707 = vrot.lane.b32.xlu0 %v704, 64
    %v708 = vpop.permute.xlu0 %707
    %711 = vst.msk [vmem:[#allocation2 + $0x2] sm:$0x1] %vm317, %v706
    %712 = vst.msk [vmem:[#allocation2 + $0xa] sm:$0x1] %vm317, %v708
    %v713 = vrot.slane %v625, 2
    %v714 = vrot.slane %v626, 1
    %v715 = vsel %vm239, %v714, %v713
    %716 = vrot.lane.b32.xlu0 %v715, 64
    %v717 = vpop.permute.xlu0 %716
    %v718 = vsel %vm244, %v717, 0
    %720 = vmatpush.msra.mxu0 0.0
    %721 = vmatpush.msra.mxu0 0.0
    %722 = vmatpush.msra.mxu0 0.0
    %723 = vmatpush.msra.mxu0 0.0
    %724 = vmatpush.msra.mxu0 0.0
    %725 = vmatpush.msra.mxu0 0.0
    %726 = vmatpush.msra.mxu0 0.0
    %727 = vmatpush.msra.mxu0 0.0
    %728 = vmatpush.msra.mxu0 0.0
    %729 = vmatpush.msra.mxu0 0.0
    %730 = vmatpush.msra.mxu0 0.0
    %731 = vmatpush.msra.mxu0 0.0
    %732 = vmatpush.msra.mxu0 %v153
    %733 = vmatpush.msra.mxu0 %v152
    %734 = vmatpush.msra.mxu0 %v151
    %735 = vmatpush.msra.mxu0 %v150
    %736 = vmatmul.f32.gmra.mxu0 %v718
    %v737 = vpop.f32.mrf.mxu0
    %v738 = vadd.f32 0.0, %v737
    %739 = vdwg.mxu0
    %v741 = vrot.slane %v738, 5
    %v742 = vrot.slane %v738, 6
    %v745 = vadd.f32 %v144, %v741
    %v746 = vadd.f32 %v145, %v742
    %v747 = vxor.u32 %v745, 2147483648
    %v748 = vxor.u32 %v746, 2147483648
    %v749 = vmul.f32 %v747, 1.442695
    %v750 = vpow.pop %v749
    %v751 = vmul.f32 %v748, 1.442695
    %v752 = vpow.pop %v751
    %v753 = vadd.f32 %v750, 1.0
    %v754 = vadd.f32 %v752, 1.0
    %v755 = vrcp.pop %v753
    %v756 = vmul.f32 %v753, %v755
    %v757 = vsub.f32 1.0, %v756
    %v758 = vmul.f32 %v755, %v757
    %v759 = vadd.f32 %v755, %v758
    %vm760 = vweird.f32 %v753
    %vm761 = vweird.f32 %v755
    %vm762 = vmor %vm760, %vm761
    %v763 = vsel %vm762, %v755, %v759
    %v764 = vand.u32 2147483647, %v753
    %vm765 = vcmp.eq.f32.partialorder %v764, 8.507059e+37
    %v766 = vand.u32 %v753, 2147483648
    %v767 = vor.u32 1.1754944e-38, %v766
    %v768 = vsel %vm765, %v767, %v763
    %v769 = vmul.f32 1.0, %v768
    %v770 = vrcp.pop %v754
    %v771 = vmul.f32 %v754, %v770
    %v772 = vsub.f32 1.0, %v771
    %v773 = vmul.f32 %v770, %v772
    %v774 = vadd.f32 %v770, %v773
    %vm775 = vweird.f32 %v754
    %vm776 = vweird.f32 %v770
    %vm777 = vmor %vm775, %vm776
    %v778 = vsel %vm777, %v770, %v774
    %v779 = vand.u32 2147483647, %v754
    %vm780 = vcmp.eq.f32.partialorder %v779, 8.507059e+37
    %v781 = vand.u32 %v754, 2147483648
    %v782 = vor.u32 1.1754944e-38, %v781
    %v783 = vsel %vm780, %v782, %v778
    %v784 = vmul.f32 1.0, %v783
    %v785 = vtanh.pop %v745
    %v786 = vtanh.pop %v746
    %v789 = vrot.slane %v613, 7
    %v790 = vrot.slane %v614, 7
    %v793 = vmul.f32 %v769, %v789
    %v794 = vmul.f32 %v784, %v790
    %797 = vrot.lane.b32.xlu0 %v785, 32
    %v798 = vpop.permute.xlu0 %797
    %799 = vrot.lane.b32.xlu0 %v786, 32
    %v800 = vpop.permute.xlu0 %799
    %v803 = vmul.f32 %v769, %v798
    %v804 = vmul.f32 %v784, %v800
    %807 = vrot.lane.b32.xlu0 %v803, 32
    %v808 = vpop.permute.xlu0 %807
    %809 = vrot.lane.b32.xlu0 %v804, 32
    %v810 = vpop.permute.xlu0 %809
    %v813 = vadd.f32 %v793, %v808
    %v814 = vadd.f32 %v794, %v810
    %v815 = vtanh.pop %v813
    %v816 = vtanh.pop %v814
    %819 = vrot.lane.b32.xlu0 %v815, 32
    %v820 = vpop.permute.xlu0 %819
    %821 = vrot.lane.b32.xlu0 %v816, 32
    %v822 = vpop.permute.xlu0 %821
    %v825 = vmul.f32 %v769, %v820
    %v826 = vmul.f32 %v784, %v822
    %v829 = vrot.slane %v826, 7
    %vm830 = vcmask 1044484
    %v831 = vsel %vm830, %v829, %v825
    %832 = vrot.lane.b32.xlu0 %v831, 64
    %v833 = vpop.permute.xlu0 %832
    %v835 = vrot.slane %v700, 5
    %836 = vrot.lane.b32.xlu0 %v835, 96
    %v837 = vpop.permute.xlu0 %836
    %v839 = vsel %vm244, %v833, %v837
    %v841 = vrot.slane %v839, 3
    %v842 = vsel %vm246, %v841, 0
    %844 = vmatpush.msra.mxu0 0.0
    %845 = vmatpush.msra.mxu0 0.0
    %846 = vmatpush.msra.mxu0 0.0
    %847 = vmatpush.msra.mxu0 0.0
    %848 = vmatpush.msra.mxu0 0.0
    %849 = vmatpush.msra.mxu0 0.0
    %850 = vmatpush.msra.mxu0 0.0
    %851 = vmatpush.msra.mxu0 0.0
    %852 = vmatpush.msra.mxu0 %v161
    %853 = vmatpush.msra.mxu0 %v160
    %854 = vmatpush.msra.mxu0 %v159
    %855 = vmatpush.msra.mxu0 %v158
    %856 = vmatpush.msra.mxu0 %v157
    %857 = vmatpush.msra.mxu0 %v156
    %858 = vmatpush.msra.mxu0 %v155
    %859 = vmatpush.msra.mxu0 %v154
    %860 = vmatmul.f32.gmra.mxu0 %v842
    %v861 = vpop.f32.mrf.mxu0
    %v862 = vadd.f32 %v148, %v861
    %863 = vdwg.mxu0
    %v864 = vxor.u32 %v862, 2147483648
    %v865 = vmul.f32 %v864, 1.442695
    %v866 = vpow.pop %v865
    %v867 = vadd.f32 %v866, 1.0
    %v868 = vrcp.pop %v867
    %v869 = vmul.f32 %v867, %v868
    %v870 = vsub.f32 1.0, %v869
    %v871 = vmul.f32 %v868, %v870
    %v872 = vadd.f32 %v868, %v871
    %vm873 = vweird.f32 %v867
    %vm874 = vweird.f32 %v868
    %vm875 = vmor %vm873, %vm874
    %v876 = vsel %vm875, %v868, %v872
    %v877 = vand.u32 2147483647, %v867
    %vm878 = vcmp.eq.f32.partialorder %v877, 8.507059e+37
    %v879 = vand.u32 %v867, 2147483648
    %v880 = vor.u32 1.1754944e-38, %v879
    %v881 = vsel %vm878, %v880, %v876
    %v882 = vmul.f32 1.0, %v881
    %v883 = vtanh.pop %v862
    %v884 = vmul.f32 %v882, %v694
    %886 = vrot.lane.b32.xlu0 %v883, 32
    %v887 = vpop.permute.xlu0 %886
    %v889 = vmul.f32 %v882, %v887
    %891 = vrot.lane.b32.xlu0 %v889, 32
    %v892 = vpop.permute.xlu0 %891
    %v894 = vadd.f32 %v884, %v892
    %v895 = vtanh.pop %v894
    %897 = vrot.lane.b32.xlu0 %v895, 32
    %v898 = vpop.permute.xlu0 %897
    %v900 = vmul.f32 %v882, %v898
    %v902 = vrot.slane %v900, 1
    %v903 = vperm.slane %v900, 0
    %v904 = vperm.slane %v902, 0
    %905 = vrot.lane.b32.xlu0 %v903, 64
    %v906 = vpop.permute.xlu0 %905
    %907 = vrot.lane.b32.xlu0 %v904, 64
    %v908 = vpop.permute.xlu0 %907
    %911 = vst.msk [vmem:[#allocation2 + $0x3] sm:$0x1] %vm317, %v906
    %912 = vst.msk [vmem:[#allocation2 + $0xb] sm:$0x1] %vm317, %v908
    %v913 = vrot.slane %v825, 3
    %v914 = vrot.slane %v826, 2
    %v915 = vsel %vm239, %v914, %v913
    %916 = vrot.lane.b32.xlu0 %v915, 64
    %v917 = vpop.permute.xlu0 %916
    %v918 = vsel %vm244, %v917, 0
    %920 = vmatpush.msra.mxu0 0.0
    %921 = vmatpush.msra.mxu0 0.0
    %922 = vmatpush.msra.mxu0 0.0
    %923 = vmatpush.msra.mxu0 0.0
    %924 = vmatpush.msra.mxu0 0.0
    %925 = vmatpush.msra.mxu0 0.0
    %926 = vmatpush.msra.mxu0 0.0
    %927 = vmatpush.msra.mxu0 0.0
    %928 = vmatpush.msra.mxu0 0.0
    %929 = vmatpush.msra.mxu0 0.0
    %930 = vmatpush.msra.mxu0 0.0
    %931 = vmatpush.msra.mxu0 0.0
    %932 = vmatpush.msra.mxu0 %v153
    %933 = vmatpush.msra.mxu0 %v152
    %934 = vmatpush.msra.mxu0 %v151
    %935 = vmatpush.msra.mxu0 %v150
    %936 = vmatmul.f32.gmra.mxu0 %v918
    %v937 = vpop.f32.mrf.mxu0
    %v938 = vadd.f32 0.0, %v937
    %939 = vdwg.mxu0
    %v941 = vrot.slane %v938, 4
    %v942 = vrot.slane %v938, 5
    %v945 = vadd.f32 %v144, %v941
    %v946 = vadd.f32 %v145, %v942
    %v947 = vxor.u32 %v945, 2147483648
    %v948 = vxor.u32 %v946, 2147483648
    %v949 = vmul.f32 %v947, 1.442695
    %v950 = vpow.pop %v949
    %v951 = vmul.f32 %v948, 1.442695
    %v952 = vpow.pop %v951
    %v953 = vadd.f32 %v950, 1.0
    %v954 = vadd.f32 %v952, 1.0
    %v955 = vrcp.pop %v953
    %v956 = vmul.f32 %v953, %v955
    %v957 = vsub.f32 1.0, %v956
    %v958 = vmul.f32 %v955, %v957
    %v959 = vadd.f32 %v955, %v958
    %vm960 = vweird.f32 %v953
    %vm961 = vweird.f32 %v955
    %vm962 = vmor %vm960, %vm961
    %v963 = vsel %vm962, %v955, %v959
    %v964 = vand.u32 2147483647, %v953
    %vm965 = vcmp.eq.f32.partialorder %v964, 8.507059e+37
    %v966 = vand.u32 %v953, 2147483648
    %v967 = vor.u32 1.1754944e-38, %v966
    %v968 = vsel %vm965, %v967, %v963
    %v969 = vmul.f32 1.0, %v968
    %v970 = vrcp.pop %v954
    %v971 = vmul.f32 %v954, %v970
    %v972 = vsub.f32 1.0, %v971
    %v973 = vmul.f32 %v970, %v972
    %v974 = vadd.f32 %v970, %v973
    %vm975 = vweird.f32 %v954
    %vm976 = vweird.f32 %v970
    %vm977 = vmor %vm975, %vm976
    %v978 = vsel %vm977, %v970, %v974
    %v979 = vand.u32 2147483647, %v954
    %vm980 = vcmp.eq.f32.partialorder %v979, 8.507059e+37
    %v981 = vand.u32 %v954, 2147483648
    %v982 = vor.u32 1.1754944e-38, %v981
    %v983 = vsel %vm980, %v982, %v978
    %v984 = vmul.f32 1.0, %v983
    %v985 = vtanh.pop %v945
    %v986 = vtanh.pop %v946
    %v989 = vrot.slane %v813, 7
    %v990 = vrot.slane %v814, 7
    %v993 = vmul.f32 %v969, %v989
    %v994 = vmul.f32 %v984, %v990
    %997 = vrot.lane.b32.xlu0 %v985, 32
    %v998 = vpop.permute.xlu0 %997
    %999 = vrot.lane.b32.xlu0 %v986, 32
    %v1000 = vpop.permute.xlu0 %999
    %v1003 = vmul.f32 %v969, %v998
    %v1004 = vmul.f32 %v984, %v1000
    %1007 = vrot.lane.b32.xlu0 %v1003, 32
    %v1008 = vpop.permute.xlu0 %1007
    %1009 = vrot.lane.b32.xlu0 %v1004, 32
    %v1010 = vpop.permute.xlu0 %1009
    %v1013 = vadd.f32 %v993, %v1008
    %v1014 = vadd.f32 %v994, %v1010
    %v1015 = vtanh.pop %v1013
    %v1016 = vtanh.pop %v1014
    %1019 = vrot.lane.b32.xlu0 %v1015, 32
    %v1020 = vpop.permute.xlu0 %1019
    %1021 = vrot.lane.b32.xlu0 %v1016, 32
    %v1022 = vpop.permute.xlu0 %1021
    %v1025 = vmul.f32 %v969, %v1020
    %v1026 = vmul.f32 %v984, %v1022
    %v1029 = vrot.slane %v1026, 7
    %vm1030 = vcmask 1045509
    %v1031 = vsel %vm1030, %v1029, %v1025
    %1032 = vrot.lane.b32.xlu0 %v1031, 64
    %v1033 = vpop.permute.xlu0 %1032
    %v1035 = vrot.slane %v900, 4
    %1036 = vrot.lane.b32.xlu0 %v1035, 96
    %v1037 = vpop.permute.xlu0 %1036
    %v1039 = vsel %vm244, %v1033, %v1037
    %v1041 = vrot.slane %v1039, 4
    %v1042 = vsel %vm246, %v1041, 0
    %1044 = vmatpush.msra.mxu0 0.0
    %1045 = vmatpush.msra.mxu0 0.0
    %1046 = vmatpush.msra.mxu0 0.0
    %1047 = vmatpush.msra.mxu0 0.0
    %1048 = vmatpush.msra.mxu0 0.0
    %1049 = vmatpush.msra.mxu0 0.0
    %1050 = vmatpush.msra.mxu0 0.0
    %1051 = vmatpush.msra.mxu0 0.0
    %1052 = vmatpush.msra.mxu0 %v161
    %1053 = vmatpush.msra.mxu0 %v160
    %1054 = vmatpush.msra.mxu0 %v159
    %1055 = vmatpush.msra.mxu0 %v158
    %1056 = vmatpush.msra.mxu0 %v157
    %1057 = vmatpush.msra.mxu0 %v156
    %1058 = vmatpush.msra.mxu0 %v155
    %1059 = vmatpush.msra.mxu0 %v154
    %1060 = vmatmul.f32.gmra.mxu0 %v1042
    %v1061 = vpop.f32.mrf.mxu0
    %v1062 = vadd.f32 %v148, %v1061
    %1063 = vdwg.mxu0
    %v1064 = vxor.u32 %v1062, 2147483648
    %v1065 = vmul.f32 %v1064, 1.442695
    %v1066 = vpow.pop %v1065
    %v1067 = vadd.f32 %v1066, 1.0
    %v1068 = vrcp.pop %v1067
    %v1069 = vmul.f32 %v1067, %v1068
    %v1070 = vsub.f32 1.0, %v1069
    %v1071 = vmul.f32 %v1068, %v1070
    %v1072 = vadd.f32 %v1068, %v1071
    %vm1073 = vweird.f32 %v1067
    %vm1074 = vweird.f32 %v1068
    %vm1075 = vmor %vm1073, %vm1074
    %v1076 = vsel %vm1075, %v1068, %v1072
    %v1077 = vand.u32 2147483647, %v1067
    %vm1078 = vcmp.eq.f32.partialorder %v1077, 8.507059e+37
    %v1079 = vand.u32 %v1067, 2147483648
    %v1080 = vor.u32 1.1754944e-38, %v1079
    %v1081 = vsel %vm1078, %v1080, %v1076
    %v1082 = vmul.f32 1.0, %v1081
    %v1083 = vtanh.pop %v1062
    %v1084 = vmul.f32 %v1082, %v894
    %1086 = vrot.lane.b32.xlu0 %v1083, 32
    %v1087 = vpop.permute.xlu0 %1086
    %v1089 = vmul.f32 %v1082, %v1087
    %1091 = vrot.lane.b32.xlu0 %v1089, 32
    %v1092 = vpop.permute.xlu0 %1091
    %v1094 = vadd.f32 %v1084, %v1092
    %v1095 = vtanh.pop %v1094
    %1097 = vrot.lane.b32.xlu0 %v1095, 32
    %v1098 = vpop.permute.xlu0 %1097
    %v1100 = vmul.f32 %v1082, %v1098
    %v1102 = vrot.slane %v1100, 1
    %v1103 = vperm.slane %v1100, 0
    %v1104 = vperm.slane %v1102, 0
    %1105 = vrot.lane.b32.xlu0 %v1103, 64
    %v1106 = vpop.permute.xlu0 %1105
    %1107 = vrot.lane.b32.xlu0 %v1104, 64
    %v1108 = vpop.permute.xlu0 %1107
    %1111 = vst.msk [vmem:[#allocation2 + $0x4] sm:$0x1] %vm317, %v1106
    %1112 = vst.msk [vmem:[#allocation2 + $0xc] sm:$0x1] %vm317, %v1108
    %v1113 = vrot.slane %v1025, 4
    %v1114 = vrot.slane %v1026, 3
    %v1115 = vsel %vm239, %v1114, %v1113
    %1116 = vrot.lane.b32.xlu0 %v1115, 64
    %v1117 = vpop.permute.xlu0 %1116
    %v1118 = vsel %vm244, %v1117, 0
    %1120 = vmatpush.msra.mxu0 0.0
    %1121 = vmatpush.msra.mxu0 0.0
    %1122 = vmatpush.msra.mxu0 0.0
    %1123 = vmatpush.msra.mxu0 0.0
    %1124 = vmatpush.msra.mxu0 0.0
    %1125 = vmatpush.msra.mxu0 0.0
    %1126 = vmatpush.msra.mxu0 0.0
    %1127 = vmatpush.msra.mxu0 0.0
    %1128 = vmatpush.msra.mxu0 0.0
    %1129 = vmatpush.msra.mxu0 0.0
    %1130 = vmatpush.msra.mxu0 0.0
    %1131 = vmatpush.msra.mxu0 0.0
    %1132 = vmatpush.msra.mxu0 %v153
    %1133 = vmatpush.msra.mxu0 %v152
    %1134 = vmatpush.msra.mxu0 %v151
    %1135 = vmatpush.msra.mxu0 %v150
    %1136 = vmatmul.f32.gmra.mxu0 %v1118
    %v1137 = vpop.f32.mrf.mxu0
    %v1138 = vadd.f32 0.0, %v1137
    %1139 = vdwg.mxu0
    %v1141 = vrot.slane %v1138, 3
    %v1142 = vrot.slane %v1138, 4
    %v1145 = vadd.f32 %v144, %v1141
    %v1146 = vadd.f32 %v145, %v1142
    %v1147 = vxor.u32 %v1145, 2147483648
    %v1148 = vxor.u32 %v1146, 2147483648
    %v1149 = vmul.f32 %v1147, 1.442695
    %v1150 = vpow.pop %v1149
    %v1151 = vmul.f32 %v1148, 1.442695
    %v1152 = vpow.pop %v1151
    %v1153 = vadd.f32 %v1150, 1.0
    %v1154 = vadd.f32 %v1152, 1.0
    %v1155 = vrcp.pop %v1153
    %v1156 = vmul.f32 %v1153, %v1155
    %v1157 = vsub.f32 1.0, %v1156
    %v1158 = vmul.f32 %v1155, %v1157
    %v1159 = vadd.f32 %v1155, %v1158
    %vm1160 = vweird.f32 %v1153
    %vm1161 = vweird.f32 %v1155
    %vm1162 = vmor %vm1160, %vm1161
    %v1163 = vsel %vm1162, %v1155, %v1159
    %v1164 = vand.u32 2147483647, %v1153
    %vm1165 = vcmp.eq.f32.partialorder %v1164, 8.507059e+37
    %v1166 = vand.u32 %v1153, 2147483648
    %v1167 = vor.u32 1.1754944e-38, %v1166
    %v1168 = vsel %vm1165, %v1167, %v1163
    %v1169 = vmul.f32 1.0, %v1168
    %v1170 = vrcp.pop %v1154
    %v1171 = vmul.f32 %v1154, %v1170
    %v1172 = vsub.f32 1.0, %v1171
    %v1173 = vmul.f32 %v1170, %v1172
    %v1174 = vadd.f32 %v1170, %v1173
    %vm1175 = vweird.f32 %v1154
    %vm1176 = vweird.f32 %v1170
    %vm1177 = vmor %vm1175, %vm1176
    %v1178 = vsel %vm1177, %v1170, %v1174
    %v1179 = vand.u32 2147483647, %v1154
    %vm1180 = vcmp.eq.f32.partialorder %v1179, 8.507059e+37
    %v1181 = vand.u32 %v1154, 2147483648
    %v1182 = vor.u32 1.1754944e-38, %v1181
    %v1183 = vsel %vm1180, %v1182, %v1178
    %v1184 = vmul.f32 1.0, %v1183
    %v1185 = vtanh.pop %v1145
    %v1186 = vtanh.pop %v1146
    %v1189 = vrot.slane %v1013, 7
    %v1190 = vrot.slane %v1014, 7
    %v1193 = vmul.f32 %v1169, %v1189
    %v1194 = vmul.f32 %v1184, %v1190
    %1197 = vrot.lane.b32.xlu0 %v1185, 32
    %v1198 = vpop.permute.xlu0 %1197
    %1199 = vrot.lane.b32.xlu0 %v1186, 32
    %v1200 = vpop.permute.xlu0 %1199
    %v1203 = vmul.f32 %v1169, %v1198
    %v1204 = vmul.f32 %v1184, %v1200
    %1207 = vrot.lane.b32.xlu0 %v1203, 32
    %v1208 = vpop.permute.xlu0 %1207
    %1209 = vrot.lane.b32.xlu0 %v1204, 32
    %v1210 = vpop.permute.xlu0 %1209
    %v1213 = vadd.f32 %v1193, %v1208
    %v1214 = vadd.f32 %v1194, %v1210
    %v1215 = vtanh.pop %v1213
    %v1216 = vtanh.pop %v1214
    %1219 = vrot.lane.b32.xlu0 %v1215, 32
    %v1220 = vpop.permute.xlu0 %1219
    %1221 = vrot.lane.b32.xlu0 %v1216, 32
    %v1222 = vpop.permute.xlu0 %1221
    %v1225 = vmul.f32 %v1169, %v1220
    %v1226 = vmul.f32 %v1184, %v1222
    %v1229 = vrot.slane %v1226, 7
    %vm1230 = vcmask 1046534
    %v1231 = vsel %vm1230, %v1229, %v1225
    %1232 = vrot.lane.b32.xlu0 %v1231, 64
    %v1233 = vpop.permute.xlu0 %1232
    %v1235 = vrot.slane %v1100, 3
    %1236 = vrot.lane.b32.xlu0 %v1235, 96
    %v1237 = vpop.permute.xlu0 %1236
    %v1239 = vsel %vm244, %v1233, %v1237
    %v1241 = vrot.slane %v1239, 5
    %v1242 = vsel %vm246, %v1241, 0
    %1244 = vmatpush.msra.mxu0 0.0
    %1245 = vmatpush.msra.mxu0 0.0
    %1246 = vmatpush.msra.mxu0 0.0
    %1247 = vmatpush.msra.mxu0 0.0
    %1248 = vmatpush.msra.mxu0 0.0
    %1249 = vmatpush.msra.mxu0 0.0
    %1250 = vmatpush.msra.mxu0 0.0
    %1251 = vmatpush.msra.mxu0 0.0
    %1252 = vmatpush.msra.mxu0 %v161
    %1253 = vmatpush.msra.mxu0 %v160
    %1254 = vmatpush.msra.mxu0 %v159
    %1255 = vmatpush.msra.mxu0 %v158
    %1256 = vmatpush.msra.mxu0 %v157
    %1257 = vmatpush.msra.mxu0 %v156
    %1258 = vmatpush.msra.mxu0 %v155
    %1259 = vmatpush.msra.mxu0 %v154
    %1260 = vmatmul.f32.gmra.mxu0 %v1242
    %v1261 = vpop.f32.mrf.mxu0
    %v1262 = vadd.f32 %v148, %v1261
    %1263 = vdwg.mxu0
    %v1264 = vxor.u32 %v1262, 2147483648
    %v1265 = vmul.f32 %v1264, 1.442695
    %v1266 = vpow.pop %v1265
    %v1267 = vadd.f32 %v1266, 1.0
    %v1268 = vrcp.pop %v1267
    %v1269 = vmul.f32 %v1267, %v1268
    %v1270 = vsub.f32 1.0, %v1269
    %v1271 = vmul.f32 %v1268, %v1270
    %v1272 = vadd.f32 %v1268, %v1271
    %vm1273 = vweird.f32 %v1267
    %vm1274 = vweird.f32 %v1268
    %vm1275 = vmor %vm1273, %vm1274
    %v1276 = vsel %vm1275, %v1268, %v1272
    %v1277 = vand.u32 2147483647, %v1267
    %vm1278 = vcmp.eq.f32.partialorder %v1277, 8.507059e+37
    %v1279 = vand.u32 %v1267, 2147483648
    %v1280 = vor.u32 1.1754944e-38, %v1279
    %v1281 = vsel %vm1278, %v1280, %v1276
    %v1282 = vmul.f32 1.0, %v1281
    %v1283 = vtanh.pop %v1262
    %v1284 = vmul.f32 %v1282, %v1094
    %1286 = vrot.lane.b32.xlu0 %v1283, 32
    %v1287 = vpop.permute.xlu0 %1286
    %v1289 = vmul.f32 %v1282, %v1287
    %1291 = vrot.lane.b32.xlu0 %v1289, 32
    %v1292 = vpop.permute.xlu0 %1291
    %v1294 = vadd.f32 %v1284, %v1292
    %v1295 = vtanh.pop %v1294
    %1297 = vrot.lane.b32.xlu0 %v1295, 32
    %v1298 = vpop.permute.xlu0 %1297
    %v1300 = vmul.f32 %v1282, %v1298
    %v1302 = vrot.slane %v1300, 1
    %v1303 = vperm.slane %v1300, 0
    %v1304 = vperm.slane %v1302, 0
    %1305 = vrot.lane.b32.xlu0 %v1303, 64
    %v1306 = vpop.permute.xlu0 %1305
    %1307 = vrot.lane.b32.xlu0 %v1304, 64
    %v1308 = vpop.permute.xlu0 %1307
    %1311 = vst.msk [vmem:[#allocation2 + $0x5] sm:$0x1] %vm317, %v1306
    %1312 = vst.msk [vmem:[#allocation2 + $0xd] sm:$0x1] %vm317, %v1308
    %v1313 = vrot.slane %v1225, 5
    %v1314 = vrot.slane %v1226, 4
    %v1315 = vsel %vm239, %v1314, %v1313
    %1316 = vrot.lane.b32.xlu0 %v1315, 64
    %v1317 = vpop.permute.xlu0 %1316
    %v1318 = vsel %vm244, %v1317, 0
    %1320 = vmatpush.msra.mxu0 0.0
    %1321 = vmatpush.msra.mxu0 0.0
    %1322 = vmatpush.msra.mxu0 0.0
    %1323 = vmatpush.msra.mxu0 0.0
    %1324 = vmatpush.msra.mxu0 0.0
    %1325 = vmatpush.msra.mxu0 0.0
    %1326 = vmatpush.msra.mxu0 0.0
    %1327 = vmatpush.msra.mxu0 0.0
    %1328 = vmatpush.msra.mxu0 0.0
    %1329 = vmatpush.msra.mxu0 0.0
    %1330 = vmatpush.msra.mxu0 0.0
    %1331 = vmatpush.msra.mxu0 0.0
    %1332 = vmatpush.msra.mxu0 %v153
    %1333 = vmatpush.msra.mxu0 %v152
    %1334 = vmatpush.msra.mxu0 %v151
    %1335 = vmatpush.msra.mxu0 %v150
    %1336 = vmatmul.f32.gmra.mxu0 %v1318
    %v1337 = vpop.f32.mrf.mxu0
    %v1338 = vadd.f32 0.0, %v1337
    %1339 = vdwg.mxu0
    %v1341 = vrot.slane %v1338, 2
    %v1342 = vrot.slane %v1338, 3
    %v1345 = vadd.f32 %v144, %v1341
    %v1346 = vadd.f32 %v145, %v1342
    %v1347 = vxor.u32 %v1345, 2147483648
    %v1348 = vxor.u32 %v1346, 2147483648
    %v1349 = vmul.f32 %v1347, 1.442695
    %v1350 = vpow.pop %v1349
    %v1351 = vmul.f32 %v1348, 1.442695
    %v1352 = vpow.pop %v1351
    %v1353 = vadd.f32 %v1350, 1.0
    %v1354 = vadd.f32 %v1352, 1.0
    %v1355 = vrcp.pop %v1353
    %v1356 = vmul.f32 %v1353, %v1355
    %v1357 = vsub.f32 1.0, %v1356
    %v1358 = vmul.f32 %v1355, %v1357
    %v1359 = vadd.f32 %v1355, %v1358
    %vm1360 = vweird.f32 %v1353
    %vm1361 = vweird.f32 %v1355
    %vm1362 = vmor %vm1360, %vm1361
    %v1363 = vsel %vm1362, %v1355, %v1359
    %v1364 = vand.u32 2147483647, %v1353
    %vm1365 = vcmp.eq.f32.partialorder %v1364, 8.507059e+37
    %v1366 = vand.u32 %v1353, 2147483648
    %v1367 = vor.u32 1.1754944e-38, %v1366
    %v1368 = vsel %vm1365, %v1367, %v1363
    %v1369 = vmul.f32 1.0, %v1368
    %v1370 = vrcp.pop %v1354
    %v1371 = vmul.f32 %v1354, %v1370
    %v1372 = vsub.f32 1.0, %v1371
    %v1373 = vmul.f32 %v1370, %v1372
    %v1374 = vadd.f32 %v1370, %v1373
    %vm1375 = vweird.f32 %v1354
    %vm1376 = vweird.f32 %v1370
    %vm1377 = vmor %vm1375, %vm1376
    %v1378 = vsel %vm1377, %v1370, %v1374
    %v1379 = vand.u32 2147483647, %v1354
    %vm1380 = vcmp.eq.f32.partialorder %v1379, 8.507059e+37
    %v1381 = vand.u32 %v1354, 2147483648
    %v1382 = vor.u32 1.1754944e-38, %v1381
    %v1383 = vsel %vm1380, %v1382, %v1378
    %v1384 = vmul.f32 1.0, %v1383
    %v1385 = vtanh.pop %v1345
    %v1386 = vtanh.pop %v1346
    %v1389 = vrot.slane %v1213, 7
    %v1390 = vrot.slane %v1214, 7
    %v1393 = vmul.f32 %v1369, %v1389
    %v1394 = vmul.f32 %v1384, %v1390
    %1397 = vrot.lane.b32.xlu0 %v1385, 32
    %v1398 = vpop.permute.xlu0 %1397
    %1399 = vrot.lane.b32.xlu0 %v1386, 32
    %v1400 = vpop.permute.xlu0 %1399
    %v1403 = vmul.f32 %v1369, %v1398
    %v1404 = vmul.f32 %v1384, %v1400
    %1407 = vrot.lane.b32.xlu0 %v1403, 32
    %v1408 = vpop.permute.xlu0 %1407
    %1409 = vrot.lane.b32.xlu0 %v1404, 32
    %v1410 = vpop.permute.xlu0 %1409
    %v1413 = vadd.f32 %v1393, %v1408
    %v1414 = vadd.f32 %v1394, %v1410
    %v1415 = vtanh.pop %v1413
    %v1416 = vtanh.pop %v1414
    %1419 = vrot.lane.b32.xlu0 %v1415, 32
    %v1420 = vpop.permute.xlu0 %1419
    %1421 = vrot.lane.b32.xlu0 %v1416, 32
    %v1422 = vpop.permute.xlu0 %1421
    %v1425 = vmul.f32 %v1369, %v1420
    %v1426 = vmul.f32 %v1384, %v1422
    %v1429 = vrot.slane %v1426, 7
    %vm1430 = vcmask 1047559
    %v1431 = vsel %vm1430, %v1429, %v1425
    %1432 = vrot.lane.b32.xlu0 %v1431, 64
    %v1433 = vpop.permute.xlu0 %1432
    %v1435 = vrot.slane %v1300, 2
    %1436 = vrot.lane.b32.xlu0 %v1435, 96
    %v1437 = vpop.permute.xlu0 %1436
    %v1439 = vsel %vm244, %v1433, %v1437
    %v1441 = vrot.slane %v1439, 6
    %v1442 = vsel %vm246, %v1441, 0
    %1444 = vmatpush.msra.mxu0 0.0
    %1445 = vmatpush.msra.mxu0 0.0
    %1446 = vmatpush.msra.mxu0 0.0
    %1447 = vmatpush.msra.mxu0 0.0
    %1448 = vmatpush.msra.mxu0 0.0
    %1449 = vmatpush.msra.mxu0 0.0
    %1450 = vmatpush.msra.mxu0 0.0
    %1451 = vmatpush.msra.mxu0 0.0
    %1452 = vmatpush.msra.mxu0 %v161
    %1453 = vmatpush.msra.mxu0 %v160
    %1454 = vmatpush.msra.mxu0 %v159
    %1455 = vmatpush.msra.mxu0 %v158
    %1456 = vmatpush.msra.mxu0 %v157
    %1457 = vmatpush.msra.mxu0 %v156
    %1458 = vmatpush.msra.mxu0 %v155
    %1459 = vmatpush.msra.mxu0 %v154
    %1460 = vmatmul.f32.gmra.mxu0 %v1442
    %v1461 = vpop.f32.mrf.mxu0
    %v1462 = vadd.f32 %v148, %v1461
    %1463 = vdwg.mxu0
    %v1464 = vxor.u32 %v1462, 2147483648
    %v1465 = vmul.f32 %v1464, 1.442695
    %v1466 = vpow.pop %v1465
    %v1467 = vadd.f32 %v1466, 1.0
    %v1468 = vrcp.pop %v1467
    %v1469 = vmul.f32 %v1467, %v1468
    %v1470 = vsub.f32 1.0, %v1469
    %v1471 = vmul.f32 %v1468, %v1470
    %v1472 = vadd.f32 %v1468, %v1471
    %vm1473 = vweird.f32 %v1467
    %vm1474 = vweird.f32 %v1468
    %vm1475 = vmor %vm1473, %vm1474
    %v1476 = vsel %vm1475, %v1468, %v1472
    %v1477 = vand.u32 2147483647, %v1467
    %vm1478 = vcmp.eq.f32.partialorder %v1477, 8.507059e+37
    %v1479 = vand.u32 %v1467, 2147483648
    %v1480 = vor.u32 1.1754944e-38, %v1479
    %v1481 = vsel %vm1478, %v1480, %v1476
    %v1482 = vmul.f32 1.0, %v1481
    %v1483 = vtanh.pop %v1462
    %v1484 = vmul.f32 %v1482, %v1294
    %1486 = vrot.lane.b32.xlu0 %v1483, 32
    %v1487 = vpop.permute.xlu0 %1486
    %v1489 = vmul.f32 %v1482, %v1487
    %1491 = vrot.lane.b32.xlu0 %v1489, 32
    %v1492 = vpop.permute.xlu0 %1491
    %v1494 = vadd.f32 %v1484, %v1492
    %v1495 = vtanh.pop %v1494
    %1497 = vrot.lane.b32.xlu0 %v1495, 32
    %v1498 = vpop.permute.xlu0 %1497
    %v1500 = vmul.f32 %v1482, %v1498
    %v1502 = vrot.slane %v1500, 1
    %v1503 = vperm.slane %v1500, 0
    %v1504 = vperm.slane %v1502, 0
    %1505 = vrot.lane.b32.xlu0 %v1503, 64
    %v1506 = vpop.permute.xlu0 %1505
    %1507 = vrot.lane.b32.xlu0 %v1504, 64
    %v1508 = vpop.permute.xlu0 %1507
    %1511 = vst.msk [vmem:[#allocation2 + $0x6] sm:$0x1] %vm317, %v1506
    %1512 = vst.msk [vmem:[#allocation2 + $0xe] sm:$0x1] %vm317, %v1508
    %v1513 = vrot.slane %v1425, 6
    %v1514 = vrot.slane %v1426, 5
    %v1515 = vsel %vm239, %v1514, %v1513
    %1516 = vrot.lane.b32.xlu0 %v1515, 64
    %v1517 = vpop.permute.xlu0 %1516
    %v1518 = vsel %vm244, %v1517, 0
    %1520 = vmatpush.msra.mxu0 0.0
    %1521 = vmatpush.msra.mxu0 0.0
    %1522 = vmatpush.msra.mxu0 0.0
    %1523 = vmatpush.msra.mxu0 0.0
    %1524 = vmatpush.msra.mxu0 0.0
    %1525 = vmatpush.msra.mxu0 0.0
    %1526 = vmatpush.msra.mxu0 0.0
    %1527 = vmatpush.msra.mxu0 0.0
    %1528 = vmatpush.msra.mxu0 0.0
    %1529 = vmatpush.msra.mxu0 0.0
    %1530 = vmatpush.msra.mxu0 0.0
    %1531 = vmatpush.msra.mxu0 0.0
    %1532 = vmatpush.msra.mxu0 %v153
    %1533 = vmatpush.msra.mxu0 %v152
    %1534 = vmatpush.msra.mxu0 %v151
    %1535 = vmatpush.msra.mxu0 %v150
    %1536 = vmatmul.f32.gmra.mxu0 %v1518
    %v1537 = vpop.f32.mrf.mxu0
    %v1538 = vadd.f32 0.0, %v1537
    %1539 = vdwg.mxu0
    %v1541 = vrot.slane %v1538, 1
    %v1542 = vrot.slane %v1538, 2
    %v1545 = vadd.f32 %v144, %v1541
    %v1546 = vadd.f32 %v145, %v1542
    %v1547 = vxor.u32 %v1545, 2147483648
    %v1548 = vxor.u32 %v1546, 2147483648
    %v1549 = vmul.f32 %v1547, 1.442695
    %v1550 = vpow.pop %v1549
    %v1551 = vmul.f32 %v1548, 1.442695
    %v1552 = vpow.pop %v1551
    %v1553 = vadd.f32 %v1550, 1.0
    %v1554 = vadd.f32 %v1552, 1.0
    %v1555 = vrcp.pop %v1553
    %v1556 = vmul.f32 %v1553, %v1555
    %v1557 = vsub.f32 1.0, %v1556
    %v1558 = vmul.f32 %v1555, %v1557
    %v1559 = vadd.f32 %v1555, %v1558
    %vm1560 = vweird.f32 %v1553
    %vm1561 = vweird.f32 %v1555
    %vm1562 = vmor %vm1560, %vm1561
    %v1563 = vsel %vm1562, %v1555, %v1559
    %v1564 = vand.u32 2147483647, %v1553
    %vm1565 = vcmp.eq.f32.partialorder %v1564, 8.507059e+37
    %v1566 = vand.u32 %v1553, 2147483648
    %v1567 = vor.u32 1.1754944e-38, %v1566
    %v1568 = vsel %vm1565, %v1567, %v1563
    %v1569 = vmul.f32 1.0, %v1568
    %v1570 = vrcp.pop %v1554
    %v1571 = vmul.f32 %v1554, %v1570
    %v1572 = vsub.f32 1.0, %v1571
    %v1573 = vmul.f32 %v1570, %v1572
    %v1574 = vadd.f32 %v1570, %v1573
    %vm1575 = vweird.f32 %v1554
    %vm1576 = vweird.f32 %v1570
    %vm1577 = vmor %vm1575, %vm1576
    %v1578 = vsel %vm1577, %v1570, %v1574
    %v1579 = vand.u32 2147483647, %v1554
    %vm1580 = vcmp.eq.f32.partialorder %v1579, 8.507059e+37
    %v1581 = vand.u32 %v1554, 2147483648
    %v1582 = vor.u32 1.1754944e-38, %v1581
    %v1583 = vsel %vm1580, %v1582, %v1578
    %v1584 = vmul.f32 1.0, %v1583
    %v1585 = vtanh.pop %v1545
    %v1586 = vtanh.pop %v1546
    %v1589 = vrot.slane %v1413, 7
    %v1590 = vrot.slane %v1414, 7
    %v1593 = vmul.f32 %v1569, %v1589
    %v1594 = vmul.f32 %v1584, %v1590
    %1597 = vrot.lane.b32.xlu0 %v1585, 32
    %v1598 = vpop.permute.xlu0 %1597
    %1599 = vrot.lane.b32.xlu0 %v1586, 32
    %v1600 = vpop.permute.xlu0 %1599
    %v1603 = vmul.f32 %v1569, %v1598
    %v1604 = vmul.f32 %v1584, %v1600
    %1607 = vrot.lane.b32.xlu0 %v1603, 32
    %v1608 = vpop.permute.xlu0 %1607
    %1609 = vrot.lane.b32.xlu0 %v1604, 32
    %v1610 = vpop.permute.xlu0 %1609
    %v1613 = vadd.f32 %v1593, %v1608
    %v1614 = vadd.f32 %v1594, %v1610
    %v1615 = vtanh.pop %v1613
    %v1616 = vtanh.pop %v1614
    %1619 = vrot.lane.b32.xlu0 %v1615, 32
    %v1620 = vpop.permute.xlu0 %1619
    %1621 = vrot.lane.b32.xlu0 %v1616, 32
    %v1622 = vpop.permute.xlu0 %1621
    %v1625 = vmul.f32 %v1569, %v1620
    %v1626 = vmul.f32 %v1584, %v1622
    %v1629 = vrot.slane %v1626, 7
    %1630 = vrot.lane.b32.xlu0 %v1625, 64
    %v1631 = vpop.permute.xlu0 %1630
    %1632 = vrot.lane.b32.xlu0 %v1629, 64
    %v1633 = vpop.permute.xlu0 %1632
    %1636 = vrot.lane.b32.xlu0 %v1502, 96
    %v1637 = vpop.permute.xlu0 %1636
    %v1639 = vsel %vm244, %v1631, %v1637
    %v1640 = vsel %vm244, %v1633, %v1637
    %v1643 = vrot.slane %v1639, 7
    %v1644 = vrot.slane %v1640, 7
    %v1645 = vsel %vm73, %v1643, %v1644
    %v1646 = vsel %vm246, %v1645, 0
    %1648 = vmatpush.msra.mxu0 0.0
    %1649 = vmatpush.msra.mxu0 0.0
    %1650 = vmatpush.msra.mxu0 0.0
    %1651 = vmatpush.msra.mxu0 0.0
    %1652 = vmatpush.msra.mxu0 0.0
    %1653 = vmatpush.msra.mxu0 0.0
    %1654 = vmatpush.msra.mxu0 0.0
    %1655 = vmatpush.msra.mxu0 0.0
    %1656 = vmatpush.msra.mxu0 %v161
    %1657 = vmatpush.msra.mxu0 %v160
    %1658 = vmatpush.msra.mxu0 %v159
    %1659 = vmatpush.msra.mxu0 %v158
    %1660 = vmatpush.msra.mxu0 %v157
    %1661 = vmatpush.msra.mxu0 %v156
    %1662 = vmatpush.msra.mxu0 %v155
    %1663 = vmatpush.msra.mxu0 %v154
    %1664 = vmatmul.f32.gmra.mxu0 %v1646
    %v1665 = vpop.f32.mrf.mxu0
    %v1666 = vadd.f32 %v148, %v1665
    %1667 = vdwg.mxu0
    %v1668 = vxor.u32 %v1666, 2147483648
    %v1669 = vmul.f32 %v1668, 1.442695
    %v1670 = vpow.pop %v1669
    %v1671 = vadd.f32 %v1670, 1.0
    %v1672 = vrcp.pop %v1671
    %v1673 = vmul.f32 %v1671, %v1672
    %v1674 = vsub.f32 1.0, %v1673
    %v1675 = vmul.f32 %v1672, %v1674
    %v1676 = vadd.f32 %v1672, %v1675
    %vm1677 = vweird.f32 %v1671
    %vm1678 = vweird.f32 %v1672
    %vm1679 = vmor %vm1677, %vm1678
    %v1680 = vsel %vm1679, %v1672, %v1676
    %v1681 = vand.u32 2147483647, %v1671
    %vm1682 = vcmp.eq.f32.partialorder %v1681, 8.507059e+37
    %v1683 = vand.u32 %v1671, 2147483648
    %v1684 = vor.u32 1.1754944e-38, %v1683
    %v1685 = vsel %vm1682, %v1684, %v1680
    %v1686 = vmul.f32 1.0, %v1685
    %v1687 = vtanh.pop %v1666
    %v1688 = vmul.f32 %v1686, %v1494
    %1690 = vrot.lane.b32.xlu0 %v1687, 32
    %v1691 = vpop.permute.xlu0 %1690
    %v1693 = vmul.f32 %v1686, %v1691
    %1695 = vrot.lane.b32.xlu0 %v1693, 32
    %v1696 = vpop.permute.xlu0 %1695
    %v1698 = vadd.f32 %v1688, %v1696
    %v1699 = vtanh.pop %v1698
    %1701 = vrot.lane.b32.xlu0 %v1699, 32
    %v1702 = vpop.permute.xlu0 %1701
    %v1704 = vmul.f32 %v1686, %v1702
    %v1706 = vrot.slane %v1704, 1
    %v1707 = vperm.slane %v1704, 0
    %v1708 = vperm.slane %v1706, 0
    %1709 = vrot.lane.b32.xlu0 %v1707, 64
    %v1710 = vpop.permute.xlu0 %1709
    %1711 = vrot.lane.b32.xlu0 %v1708, 64
    %v1712 = vpop.permute.xlu0 %1711
    %1715 = vst.msk [vmem:[#allocation2 + $0x7] sm:$0x1] %vm317, %v1710
    %1716 = vst.msk [vmem:[#allocation2 + $0xf] sm:$0x1] %vm317, %v1712
    %v1717 = vld [vmem:[#allocation2] sm:$0xff]
    %v1718 = vld [vmem:[#allocation2 + $0x8] sm:$0xff]
    %v1719 = vld [vmem:[%s7] sm:$0xff]
    %v1720 = vld [vmem:[%s7 + $0x8] sm:$0xff]
    %v1721 = vld [vmem:[%s7 + $0x10] sm:$0xff]
    %v1722 = vld [vmem:[%s7 + $0x18] sm:$0xff]
    %v1723 = vld [vmem:[%s8] sm:$0x1]
    %v1725 = vperm.slane %v1723, 0
    %v1728 = vsel %vm244, %v1717, 0
    %v1731 = vsel %vm244, %v1718, 0
    %1733 = vmatpush.msra.mxu0 0.0
    %1734 = vmatpush.msra.mxu0 0.0
    %1735 = vmatpush.msra.mxu0 0.0
    %1736 = vmatpush.msra.mxu0 0.0
    %1737 = vmatpush.msra.mxu0 0.0
    %1738 = vmatpush.msra.mxu0 0.0
    %1739 = vmatpush.msra.mxu0 0.0
    %1740 = vmatpush.msra.mxu0 0.0
    %1741 = vmatpush.msra.mxu0 0.0
    %1742 = vmatpush.msra.mxu0 0.0
    %1743 = vmatpush.msra.mxu0 0.0
    %1744 = vmatpush.msra.mxu0 0.0
    %1745 = vmatpush.msra.mxu0 %v1722
    %1746 = vmatpush.msra.mxu0 %v1721
    %1747 = vmatpush.msra.mxu0 %v1720
    %1748 = vmatpush.msra.mxu0 %v1719
    %1749 = vmatmul.f32.gmra.mxu0 %v1728
    %v1750 = vpop.f32.mrf.mxu0
    %v1751 = vadd.f32 %v1725, %v1750
    %1752 = vmatmul.f32.gmra.mxu0 %v1731
    %v1753 = vpop.f32.mrf.mxu0
    %v1754 = vadd.f32 %v1725, %v1753
    %1755 = vdwg.mxu0
    %1756 = vst.msk [vmem:[%s9] sm:$0xff] %vm104, %v1751
    %1757 = vst.msk [vmem:[%s9 + $0x8] sm:$0xff] %vm104, %v1754
    // Predicated region
    $region46: #{diffusion_forward.1} parent=1 // pred_check
      _
    $region47: #{diffusion_forward.1} parent=1 // pred_check_branch
      %1759 = sbr.rel (0) target = $region49
    $region48: #{diffusion_forward.1} parent=1 // pred_region
      _
    $region49: #{diffusion_forward.1} parent=1 // pred_fallthru
      _
    // Predicated region
    $region50: #{diffusion_forward.1} parent=1 // pred_check
      _
    $region51: #{diffusion_forward.1} parent=1 // pred_check_branch
      %1761 = sbr.rel (0) target = $region53
    $region52: #{diffusion_forward.1} parent=1 // pred_region
      _
    $region53: #{diffusion_forward.1} parent=1 // pred_fallthru
      _
    %1762 = vsyncpa [#allocation4], 1
    %1763 = vsyncpa [#allocation5], 1

</llo_original>
